<compile_context>
chip_gen: v7x
topology: tpu7x:2x2x1
jax: 0.10.0
libtpu: 0.0.40
codegen_flags: <defaults>
</compile_context>

<pallas_src>
import jax
import jax.numpy as jnp
import numpy as np
from jax.experimental import pallas as pl
from jax.experimental.pallas import tpu as pltpu


# ----------------------------------------------------------------------------
# Fused kernel: hoisted input projection + unrolled LSTM recurrence +
# post-loop batched vocab projection.  PyTorch gate ordering: i, f, g, o.
# ----------------------------------------------------------------------------
def fused_lm_kernel(emb_ref, wih_ref, whh_ref, b_ref, h0_ref, c0_ref,
                    wlin_ref, blin_ref, logits_ref, hn_ref, cn_ref, hseq_ref):
    TB, _ = emb_ref.shape              # time-major flattened embeds (T*B, E)
    B, H = h0_ref.shape
    T = TB // B
    V = wlin_ref.shape[-1]

    # (1) Hoisted input projection: one (T*B, E) @ (E, 4H) matmul + bias for
    #     all timesteps at once.
    xproj = (jnp.dot(emb_ref[...], wih_ref[...],
                     preferred_element_type=jnp.float32)
             + b_ref[...])             # (T*B, 4H), row = t*B + b

    whh = whh_ref[...]                 # (H, 4H)
    h = h0_ref[...]                    # (B, H)
    c = c0_ref[...]                    # (B, H)

    # (2) Serial recurrence, fully unrolled (T small & static).  Critical path
    #     per step: h @ W_hh (MXU, RHS stays the same every step) + gate math.
    for t in range(T):
        gates = xproj[t * B:(t + 1) * B, :] + jnp.dot(
            h, whh, preferred_element_type=jnp.float32)      # (B, 4H)
        i_g = jax.nn.sigmoid(gates[:, 0 * H:1 * H])
        f_g = jax.nn.sigmoid(gates[:, 1 * H:2 * H])
        g_g = jnp.tanh(gates[:, 2 * H:3 * H])
        o_g = jax.nn.sigmoid(gates[:, 3 * H:4 * H])
        c = f_g * c + i_g * g_g
        h = o_g * jnp.tanh(c)
        hseq_ref[t * B:(t + 1) * B, :] = h                   # stash h_t

    hn_ref[...] = h
    cn_ref[...] = c

    # (3) Batched vocab projection, off the serial path: ONE (T*B, H) @ (H, V)
    #     bf16 MXU matmul with f32 accumulation, bias applied once.
    logits_tm = (jnp.dot(hseq_ref[...].astype(jnp.bfloat16), wlin_ref[...],
                         preferred_element_type=jnp.float32)
                 + blin_ref[...])                            # (T*B, V)

    # Scatter T time-slices into lane-contiguous columns of the (B, T*V)
    # output (V multiple of 128 -> unmasked vst); the wrapper reshape to
    # (B*T, V) then reproduces PyTorch's `out.contiguous().view(B*T, -1)`.
    for t in range(T):
        logits_ref[:, t * V:(t + 1) * V] = (
            logits_tm[t * B:(t + 1) * B, :].astype(logits_ref.dtype))


# ----------------------------------------------------------------------------
# One-time parameter preparation (no per-forward transposes / casts).
# ----------------------------------------------------------------------------
def prepare_params(params):
    four_h = params["w_ih"].shape[0]
    return {
        "embed": params["embed"],                                   # (Vocab, E)
        "w_ih_t": jnp.transpose(params["w_ih"]),                    # (E, 4H)
        "w_hh_t": jnp.transpose(params["w_hh"]),                    # (H, 4H)
        "bias": (params["b_ih"] + params["b_hh"]).reshape(1, four_h),
        "w_lin_t": jnp.transpose(params["w_lin"]).astype(jnp.bfloat16),  # (H, V)
        "b_lin": params["b_lin"].reshape(1, -1),                    # (1, V)
    }


# ----------------------------------------------------------------------------
# Full model forward (mirrors LanguageModel.forward with is_training=False).
# Expects `prep = prepare_params(params)` (weights already transposed/cast).
# ----------------------------------------------------------------------------
def language_model_forward(inputs, hidden, prep):
    h0, c0 = hidden                               # each (n_layers=1, B, H)
    B, T = inputs.shape
    E = prep["embed"].shape[1]
    H = h0.shape[-1]
    V = prep["w_lin_t"].shape[-1]

    # Embedding gather directly into flat time-major (T*B, E): row = t*B + b.
    ids_tm = inputs.T.reshape(-1)                            # (T*B,)
    emb_flat = jnp.take(prep["embed"], ids_tm, axis=0)       # (T*B, E)

    grid_spec = pltpu.PrefetchScalarGridSpec(
        num_scalar_prefetch=0,
        grid=(1,),
        in_specs=[
            pl.BlockSpec((T * B, E), lambda i: (0, 0)),
            pl.BlockSpec((E, 4 * H), lambda i: (0, 0)),
            pl.BlockSpec((H, 4 * H), lambda i: (0, 0)),
            pl.BlockSpec((1, 4 * H), lambda i: (0, 0)),
            pl.BlockSpec((B, H), lambda i: (0, 0)),
            pl.BlockSpec((B, H), lambda i: (0, 0)),
            pl.BlockSpec((H, V), lambda i: (0, 0)),
            pl.BlockSpec((1, V), lambda i: (0, 0)),
        ],
        out_specs=[
            pl.BlockSpec((B, T * V), lambda i: (0, 0)),
            pl.BlockSpec((B, H), lambda i: (0, 0)),
            pl.BlockSpec((B, H), lambda i: (0, 0)),
        ],
        scratch_shapes=[pltpu.VMEM((T * B, H), jnp.float32)],
    )

    logits_btv, h_n, c_n = pl.pallas_call(
        fused_lm_kernel,
        out_shape=(jax.ShapeDtypeStruct((B, T * V), jnp.float32),
                   jax.ShapeDtypeStruct((B, H), jnp.float32),
                   jax.ShapeDtypeStruct((B, H), jnp.float32)),
        grid_spec=grid_spec,
        compiler_params=pltpu.CompilerParams(
            dimension_semantics=("arbitrary",)),
    )(emb_flat, prep["w_ih_t"], prep["w_hh_t"], prep["bias"],
      h0[0], c0[0], prep["w_lin_t"], prep["b_lin"])

    # Free row-major view: (B, T*V) -> (B*T, V), row = b*T + t, exactly like
    # PyTorch's out.contiguous().view(B*T, -1) followed by the Linear.
    logits = logits_btv.reshape(B * T, V)
    return logits, (h_n[None], c_n[None])


# ----------------------------------------------------------------------------
# Pure-JAX (f32) reference for a correctness check.
# ----------------------------------------------------------------------------
def reference_forward(inputs, hidden, params):
    h0, c0 = hidden
    embeds = jnp.take(params["embed"], inputs, axis=0)       # (B, T, E)
    H = h0.shape[-1]
    wih_t = params["w_ih"].T
    whh_t = params["w_hh"].T
    bias = params["b_ih"] + params["b_hh"]

    def step(carry, x_t):
        h, c = carry
        gates = x_t @ wih_t + h @ whh_t + bias
        i = jax.nn.sigmoid(gates[:, 0 * H:1 * H])
        f = jax.nn.sigmoid(gates[:, 1 * H:2 * H])
        g = jnp.tanh(gates[:, 2 * H:3 * H])
        o = jax.nn.sigmoid(gates[:, 3 * H:4 * H])
        c = f * c + i * g
        h = o * jnp.tanh(c)
        return (h, c), h

    (h_n, c_n), h_seq_tm = jax.lax.scan(
        step, (h0[0], c0[0]), jnp.transpose(embeds, (1, 0, 2)))
    h_seq = jnp.transpose(h_seq_tm, (1, 0, 2))
    B, T, _ = h_seq.shape
    logits = h_seq.reshape(B * T, H) @ params["w_lin"].T + params["b_lin"]
    return logits, (h_n[None], c_n[None])


if __name__ == "__main__":
    VOCAB, EMBED, HIDDEN = 256, 128, 128
    B, T = 8, 8

    key = jax.random.PRNGKey(0)
    ks = jax.random.split(key, 7)
    params = {
        "embed": (0.1 * jax.random.normal(ks[0], (VOCAB, EMBED))).astype(jnp.float32),
        "w_ih": (0.05 * jax.random.normal(ks[1], (4 * HIDDEN, EMBED))).astype(jnp.float32),
        "w_hh": (0.05 * jax.random.normal(ks[2], (4 * HIDDEN, HIDDEN))).astype(jnp.float32),
        "b_ih": (0.05 * jax.random.normal(ks[3], (4 * HIDDEN,))).astype(jnp.float32),
        "b_hh": (0.05 * jax.random.normal(ks[4], (4 * HIDDEN,))).astype(jnp.float32),
        "w_lin": (0.05 * jax.random.normal(ks[5], (VOCAB, HIDDEN))).astype(jnp.float32),
        "b_lin": jnp.zeros((VOCAB,), jnp.float32),
    }
    inputs = jax.random.randint(ks[6], (B, T), 0, VOCAB, dtype=jnp.int32)

    # init_hidden(batch_size): zeros of shape (n_layers, B, H)
    h0 = jnp.zeros((1, B, HIDDEN), jnp.float32)
    c0 = jnp.zeros((1, B, HIDDEN), jnp.float32)

    prep = prepare_params(params)                 # one-time weight prep
    fwd = jax.jit(language_model_forward)

    logits, (h_n, c_n) = fwd(inputs, (h0, c0), prep)
    jax.block_until_ready(logits)

    ref_logits, (ref_h, ref_c) = reference_forward(inputs, (h0, c0), params)
    assert logits.shape == (B * T, VOCAB)
    assert h_n.shape == (1, B, HIDDEN) and c_n.shape == (1, B, HIDDEN)
    # Logits tolerance is loosened because the vocab projection uses bf16
    # operands (f32 accumulation); the recurrence / final state stay f32.
    np.testing.assert_allclose(np.asarray(logits), np.asarray(ref_logits),
                               rtol=1e-2, atol=1e-2)
    np.testing.assert_allclose(np.asarray(h_n), np.asarray(ref_h),
                               rtol=1e-3, atol=1e-3)
    np.testing.assert_allclose(np.asarray(c_n), np.asarray(ref_c),
                               rtol=1e-3, atol=1e-3)

    print("KERNEL_OK")
</pallas_src>

<mosaic_0001>
module attributes {stable_mosaic.version = 11 : i64} {
  func.func @fused_lm_kernel(%arg0: i32, %arg1: memref<64x128xf32, #tpu.memory_space<vmem>>, %arg2: memref<128x512xf32, #tpu.memory_space<vmem>>, %arg3: memref<128x512xf32, #tpu.memory_space<vmem>>, %arg4: memref<1x512xf32, #tpu.memory_space<vmem>>, %arg5: memref<8x128xf32, #tpu.memory_space<vmem>>, %arg6: memref<8x128xf32, #tpu.memory_space<vmem>>, %arg7: memref<128x256xbf16, #tpu.memory_space<vmem>>, %arg8: memref<1x256xf32, #tpu.memory_space<vmem>>, %arg9: memref<8x2048xf32, #tpu.memory_space<vmem>>, %arg10: memref<8x128xf32, #tpu.memory_space<vmem>>, %arg11: memref<8x128xf32, #tpu.memory_space<vmem>>, %arg12: memref<64x128xf32, #tpu.memory_space<vmem>>) attributes {dimension_semantics = [#tpu.dimension_semantics<arbitrary>], iteration_bounds = array<i64: 1>, scalar_prefetch = 0 : i64, scratch_operands = 1 : i64, tpu.core_type = #tpu.core_type<tc>, window_params = [{pipeline_mode = #tpu.pipeline_mode<synchronous>, transform_indices = @transform_0, window_bounds = array<i64: 64, 128>}, {pipeline_mode = #tpu.pipeline_mode<synchronous>, transform_indices = @transform_1, window_bounds = array<i64: 128, 512>}, {pipeline_mode = #tpu.pipeline_mode<synchronous>, transform_indices = @transform_2, window_bounds = array<i64: 128, 512>}, {pipeline_mode = #tpu.pipeline_mode<synchronous>, transform_indices = @transform_3, window_bounds = array<i64: 1, 512>}, {pipeline_mode = #tpu.pipeline_mode<synchronous>, transform_indices = @transform_4, window_bounds = array<i64: 8, 128>}, {pipeline_mode = #tpu.pipeline_mode<synchronous>, transform_indices = @transform_5, window_bounds = array<i64: 8, 128>}, {pipeline_mode = #tpu.pipeline_mode<synchronous>, transform_indices = @transform_6, window_bounds = array<i64: 128, 256>}, {pipeline_mode = #tpu.pipeline_mode<synchronous>, transform_indices = @transform_7, window_bounds = array<i64: 1, 256>}, {pipeline_mode = #tpu.pipeline_mode<synchronous>, transform_indices = @transform_8, window_bounds = array<i64: 8, 2048>}, {pipeline_mode = #tpu.pipeline_mode<synchronous>, transform_indices = @transform_9, window_bounds = array<i64: 8, 128>}, {pipeline_mode = #tpu.pipeline_mode<synchronous>, transform_indices = @transform_10, window_bounds = array<i64: 8, 128>}]} {
    %c0 = arith.constant 0 : index
    %c0_0 = arith.constant 0 : index
    %0 = vector.load %arg1[%c0, %c0_0] : memref<64x128xf32, #tpu.memory_space<vmem>>, vector<64x128xf32>
    %c0_1 = arith.constant 0 : index
    %c0_2 = arith.constant 0 : index
    %1 = vector.load %arg2[%c0_1, %c0_2] : memref<128x512xf32, #tpu.memory_space<vmem>>, vector<128x512xf32>
    %cst = arith.constant dense<0.000000e+00> : vector<64x512xf32>
    %2 = tpu.matmul %0, %1, %cst {dimension_numbers = #tpu.dot_dimension_numbers<[1], [0], [0], [1], [0, 0, 1, 1], [], []>} : vector<64x128xf32>, vector<128x512xf32>, vector<64x512xf32> -> vector<64x512xf32>
    %c0_3 = arith.constant 0 : index
    %c0_4 = arith.constant 0 : index
    %3 = vector.load %arg4[%c0_3, %c0_4] : memref<1x512xf32, #tpu.memory_space<vmem>>, vector<1x512xf32>
    %4 = vector.broadcast %3 : vector<1x512xf32> to vector<64x512xf32>
    %5 = arith.addf %2, %4 : vector<64x512xf32>
    %c0_5 = arith.constant 0 : index
    %c0_6 = arith.constant 0 : index
    %6 = vector.load %arg3[%c0_5, %c0_6] : memref<128x512xf32, #tpu.memory_space<vmem>>, vector<128x512xf32>
    %c0_7 = arith.constant 0 : index
    %c0_8 = arith.constant 0 : index
    %7 = vector.load %arg5[%c0_7, %c0_8] : memref<8x128xf32, #tpu.memory_space<vmem>>, vector<8x128xf32>
    %c0_9 = arith.constant 0 : index
    %c0_10 = arith.constant 0 : index
    %8 = vector.load %arg6[%c0_9, %c0_10] : memref<8x128xf32, #tpu.memory_space<vmem>>, vector<8x128xf32>
    %9 = vector.extract_strided_slice %5 {offsets = [0, 0], sizes = [8, 512], strides = [1, 1]} : vector<64x512xf32> to vector<8x512xf32>
    %cst_11 = arith.constant dense<0.000000e+00> : vector<8x512xf32>
    %10 = tpu.matmul %7, %6, %cst_11 {dimension_numbers = #tpu.dot_dimension_numbers<[1], [0], [0], [1], [0, 0, 1, 1], [], []>} : vector<8x128xf32>, vector<128x512xf32>, vector<8x512xf32> -> vector<8x512xf32>
    %11 = arith.addf %9, %10 : vector<8x512xf32>
    %12 = vector.extract_strided_slice %11 {offsets = [0, 0], sizes = [8, 128], strides = [1, 1]} : vector<8x512xf32> to vector<8x128xf32>
    %13 = arith.negf %12 : vector<8x128xf32>
    %14 = math.exp %13 : vector<8x128xf32>
    %cst_12 = arith.constant 1.000000e+00 : f32
    %15 = vector.broadcast %cst_12 : f32 to vector<8x128xf32>
    %16 = arith.addf %15, %14 : vector<8x128xf32>
    %17 = arith.divf %15, %16 : vector<8x128xf32>
    %18 = vector.extract_strided_slice %11 {offsets = [0, 128], sizes = [8, 128], strides = [1, 1]} : vector<8x512xf32> to vector<8x128xf32>
    %19 = arith.negf %18 : vector<8x128xf32>
    %20 = math.exp %19 : vector<8x128xf32>
    %cst_13 = arith.constant 1.000000e+00 : f32
    %21 = vector.broadcast %cst_13 : f32 to vector<8x128xf32>
    %22 = arith.addf %21, %20 : vector<8x128xf32>
    %23 = arith.divf %21, %22 : vector<8x128xf32>
    %24 = vector.extract_strided_slice %11 {offsets = [0, 256], sizes = [8, 128], strides = [1, 1]} : vector<8x512xf32> to vector<8x128xf32>
    %25 = math.tanh %24 : vector<8x128xf32>
    %26 = vector.extract_strided_slice %11 {offsets = [0, 384], sizes = [8, 128], strides = [1, 1]} : vector<8x512xf32> to vector<8x128xf32>
    %27 = arith.negf %26 : vector<8x128xf32>
    %28 = math.exp %27 : vector<8x128xf32>
    %cst_14 = arith.constant 1.000000e+00 : f32
    %29 = vector.broadcast %cst_14 : f32 to vector<8x128xf32>
    %30 = arith.addf %29, %28 : vector<8x128xf32>
    %31 = arith.divf %29, %30 : vector<8x128xf32>
    %32 = arith.mulf %23, %8 : vector<8x128xf32>
    %33 = arith.mulf %17, %25 : vector<8x128xf32>
    %34 = arith.addf %32, %33 : vector<8x128xf32>
    %35 = math.tanh %34 : vector<8x128xf32>
    %36 = arith.mulf %31, %35 : vector<8x128xf32>
    %c0_15 = arith.constant 0 : index
    %c0_16 = arith.constant 0 : index
    %37 = vector.load %arg12[%c0_15, %c0_16] : memref<64x128xf32, #tpu.memory_space<vmem>>, vector<8x128xf32>
    tpu.vector_store %arg12[%c0_15, %c0_16], %36 {strides = array<i32>} : memref<64x128xf32, #tpu.memory_space<vmem>>, vector<8x128xf32>,
    %38 = vector.extract_strided_slice %5 {offsets = [8, 0], sizes = [8, 512], strides = [1, 1]} : vector<64x512xf32> to vector<8x512xf32>
    %cst_17 = arith.constant dense<0.000000e+00> : vector<8x512xf32>
    %39 = tpu.matmul %36, %6, %cst_17 {dimension_numbers = #tpu.dot_dimension_numbers<[1], [0], [0], [1], [0, 0, 1, 1], [], []>} : vector<8x128xf32>, vector<128x512xf32>, vector<8x512xf32> -> vector<8x512xf32>
    %40 = arith.addf %38, %39 : vector<8x512xf32>
    %41 = vector.extract_strided_slice %40 {offsets = [0, 0], sizes = [8, 128], strides = [1, 1]} : vector<8x512xf32> to vector<8x128xf32>
    %42 = arith.negf %41 : vector<8x128xf32>
    %43 = math.exp %42 : vector<8x128xf32>
    %cst_18 = arith.constant 1.000000e+00 : f32
    %44 = vector.broadcast %cst_18 : f32 to vector<8x128xf32>
    %45 = arith.addf %44, %43 : vector<8x128xf32>
    %46 = arith.divf %44, %45 : vector<8x128xf32>
    %47 = vector.extract_strided_slice %40 {offsets = [0, 128], sizes = [8, 128], strides = [1, 1]} : vector<8x512xf32> to vector<8x128xf32>
    %48 = arith.negf %47 : vector<8x128xf32>
    %49 = math.exp %48 : vector<8x128xf32>
    %cst_19 = arith.constant 1.000000e+00 : f32
    %50 = vector.broadcast %cst_19 : f32 to vector<8x128xf32>
    %51 = arith.addf %50, %49 : vector<8x128xf32>
    %52 = arith.divf %50, %51 : vector<8x128xf32>
    %53 = vector.extract_strided_slice %40 {offsets = [0, 256], sizes = [8, 128], strides = [1, 1]} : vector<8x512xf32> to vector<8x128xf32>
    %54 = math.tanh %53 : vector<8x128xf32>
    %55 = vector.extract_strided_slice %40 {offsets = [0, 384], sizes = [8, 128], strides = [1, 1]} : vector<8x512xf32> to vector<8x128xf32>
    %56 = arith.negf %55 : vector<8x128xf32>
    %57 = math.exp %56 : vector<8x128xf32>
    %cst_20 = arith.constant 1.000000e+00 : f32
    %58 = vector.broadcast %cst_20 : f32 to vector<8x128xf32>
    %59 = arith.addf %58, %57 : vector<8x128xf32>
    %60 = arith.divf %58, %59 : vector<8x128xf32>
    %61 = arith.mulf %52, %34 : vector<8x128xf32>
    %62 = arith.mulf %46, %54 : vector<8x128xf32>
    %63 = arith.addf %61, %62 : vector<8x128xf32>
    %64 = math.tanh %63 : vector<8x128xf32>
    %65 = arith.mulf %60, %64 : vector<8x128xf32>
    %c8 = arith.constant 8 : index
    %c0_21 = arith.constant 0 : index
    %66 = vector.load %arg12[%c8, %c0_21] : memref<64x128xf32, #tpu.memory_space<vmem>>, vector<8x128xf32>
    tpu.vector_store %arg12[%c8, %c0_21], %65 {strides = array<i32>} : memref<64x128xf32, #tpu.memory_space<vmem>>, vector<8x128xf32>,
    %67 = vector.extract_strided_slice %5 {offsets = [16, 0], sizes = [8, 512], strides = [1, 1]} : vector<64x512xf32> to vector<8x512xf32>
    %cst_22 = arith.constant dense<0.000000e+00> : vector<8x512xf32>
    %68 = tpu.matmul %65, %6, %cst_22 {dimension_numbers = #tpu.dot_dimension_numbers<[1], [0], [0], [1], [0, 0, 1, 1], [], []>} : vector<8x128xf32>, vector<128x512xf32>, vector<8x512xf32> -> vector<8x512xf32>
    %69 = arith.addf %67, %68 : vector<8x512xf32>
    %70 = vector.extract_strided_slice %69 {offsets = [0, 0], sizes = [8, 128], strides = [1, 1]} : vector<8x512xf32> to vector<8x128xf32>
    %71 = arith.negf %70 : vector<8x128xf32>
    %72 = math.exp %71 : vector<8x128xf32>
    %cst_23 = arith.constant 1.000000e+00 : f32
    %73 = vector.broadcast %cst_23 : f32 to vector<8x128xf32>
    %74 = arith.addf %73, %72 : vector<8x128xf32>
    %75 = arith.divf %73, %74 : vector<8x128xf32>
    %76 = vector.extract_strided_slice %69 {offsets = [0, 128], sizes = [8, 128], strides = [1, 1]} : vector<8x512xf32> to vector<8x128xf32>
    %77 = arith.negf %76 : vector<8x128xf32>
    %78 = math.exp %77 : vector<8x128xf32>
    %cst_24 = arith.constant 1.000000e+00 : f32
    %79 = vector.broadcast %cst_24 : f32 to vector<8x128xf32>
    %80 = arith.addf %79, %78 : vector<8x128xf32>
    %81 = arith.divf %79, %80 : vector<8x128xf32>
    %82 = vector.extract_strided_slice %69 {offsets = [0, 256], sizes = [8, 128], strides = [1, 1]} : vector<8x512xf32> to vector<8x128xf32>
    %83 = math.tanh %82 : vector<8x128xf32>
    %84 = vector.extract_strided_slice %69 {offsets = [0, 384], sizes = [8, 128], strides = [1, 1]} : vector<8x512xf32> to vector<8x128xf32>
    %85 = arith.negf %84 : vector<8x128xf32>
    %86 = math.exp %85 : vector<8x128xf32>
    %cst_25 = arith.constant 1.000000e+00 : f32
    %87 = vector.broadcast %cst_25 : f32 to vector<8x128xf32>
    %88 = arith.addf %87, %86 : vector<8x128xf32>
    %89 = arith.divf %87, %88 : vector<8x128xf32>
    %90 = arith.mulf %81, %63 : vector<8x128xf32>
    %91 = arith.mulf %75, %83 : vector<8x128xf32>
    %92 = arith.addf %90, %91 : vector<8x128xf32>
    %93 = math.tanh %92 : vector<8x128xf32>
    %94 = arith.mulf %89, %93 : vector<8x128xf32>
    %c16 = arith.constant 16 : index
    %c0_26 = arith.constant 0 : index
    %95 = vector.load %arg12[%c16, %c0_26] : memref<64x128xf32, #tpu.memory_space<vmem>>, vector<8x128xf32>
    tpu.vector_store %arg12[%c16, %c0_26], %94 {strides = array<i32>} : memref<64x128xf32, #tpu.memory_space<vmem>>, vector<8x128xf32>,
    %96 = vector.extract_strided_slice %5 {offsets = [24, 0], sizes = [8, 512], strides = [1, 1]} : vector<64x512xf32> to vector<8x512xf32>
    %cst_27 = arith.constant dense<0.000000e+00> : vector<8x512xf32>
    %97 = tpu.matmul %94, %6, %cst_27 {dimension_numbers = #tpu.dot_dimension_numbers<[1], [0], [0], [1], [0, 0, 1, 1], [], []>} : vector<8x128xf32>, vector<128x512xf32>, vector<8x512xf32> -> vector<8x512xf32>
    %98 = arith.addf %96, %97 : vector<8x512xf32>
    %99 = vector.extract_strided_slice %98 {offsets = [0, 0], sizes = [8, 128], strides = [1, 1]} : vector<8x512xf32> to vector<8x128xf32>
    %100 = arith.negf %99 : vector<8x128xf32>
    %101 = math.exp %100 : vector<8x128xf32>
    %cst_28 = arith.constant 1.000000e+00 : f32
    %102 = vector.broadcast %cst_28 : f32 to vector<8x128xf32>
    %103 = arith.addf %102, %101 : vector<8x128xf32>
    %104 = arith.divf %102, %103 : vector<8x128xf32>
    %105 = vector.extract_strided_slice %98 {offsets = [0, 128], sizes = [8, 128], strides = [1, 1]} : vector<8x512xf32> to vector<8x128xf32>
    %106 = arith.negf %105 : vector<8x128xf32>
    %107 = math.exp %106 : vector<8x128xf32>
    %cst_29 = arith.constant 1.000000e+00 : f32
    %108 = vector.broadcast %cst_29 : f32 to vector<8x128xf32>
    %109 = arith.addf %108, %107 : vector<8x128xf32>
    %110 = arith.divf %108, %109 : vector<8x128xf32>
    %111 = vector.extract_strided_slice %98 {offsets = [0, 256], sizes = [8, 128], strides = [1, 1]} : vector<8x512xf32> to vector<8x128xf32>
    %112 = math.tanh %111 : vector<8x128xf32>
    %113 = vector.extract_strided_slice %98 {offsets = [0, 384], sizes = [8, 128], strides = [1, 1]} : vector<8x512xf32> to vector<8x128xf32>
    %114 = arith.negf %113 : vector<8x128xf32>
    %115 = math.exp %114 : vector<8x128xf32>
    %cst_30 = arith.constant 1.000000e+00 : f32
    %116 = vector.broadcast %cst_30 : f32 to vector<8x128xf32>
    %117 = arith.addf %116, %115 : vector<8x128xf32>
    %118 = arith.divf %116, %117 : vector<8x128xf32>
    %119 = arith.mulf %110, %92 : vector<8x128xf32>
    %120 = arith.mulf %104, %112 : vector<8x128xf32>
    %121 = arith.addf %119, %120 : vector<8x128xf32>
    %122 = math.tanh %121 : vector<8x128xf32>
    %123 = arith.mulf %118, %122 : vector<8x128xf32>
    %c24 = arith.constant 24 : index
    %c0_31 = arith.constant 0 : index
    %124 = vector.load %arg12[%c24, %c0_31] : memref<64x128xf32, #tpu.memory_space<vmem>>, vector<8x128xf32>
    tpu.vector_store %arg12[%c24, %c0_31], %123 {strides = array<i32>} : memref<64x128xf32, #tpu.memory_space<vmem>>, vector<8x128xf32>,
    %125 = vector.extract_strided_slice %5 {offsets = [32, 0], sizes = [8, 512], strides = [1, 1]} : vector<64x512xf32> to vector<8x512xf32>
    %cst_32 = arith.constant dense<0.000000e+00> : vector<8x512xf32>
    %126 = tpu.matmul %123, %6, %cst_32 {dimension_numbers = #tpu.dot_dimension_numbers<[1], [0], [0], [1], [0, 0, 1, 1], [], []>} : vector<8x128xf32>, vector<128x512xf32>, vector<8x512xf32> -> vector<8x512xf32>
    %127 = arith.addf %125, %126 : vector<8x512xf32>
    %128 = vector.extract_strided_slice %127 {offsets = [0, 0], sizes = [8, 128], strides = [1, 1]} : vector<8x512xf32> to vector<8x128xf32>
    %129 = arith.negf %128 : vector<8x128xf32>
    %130 = math.exp %129 : vector<8x128xf32>
    %cst_33 = arith.constant 1.000000e+00 : f32
    %131 = vector.broadcast %cst_33 : f32 to vector<8x128xf32>
    %132 = arith.addf %131, %130 : vector<8x128xf32>
    %133 = arith.divf %131, %132 : vector<8x128xf32>
    %134 = vector.extract_strided_slice %127 {offsets = [0, 128], sizes = [8, 128], strides = [1, 1]} : vector<8x512xf32> to vector<8x128xf32>
    %135 = arith.negf %134 : vector<8x128xf32>
    %136 = math.exp %135 : vector<8x128xf32>
    %cst_34 = arith.constant 1.000000e+00 : f32
    %137 = vector.broadcast %cst_34 : f32 to vector<8x128xf32>
    %138 = arith.addf %137, %136 : vector<8x128xf32>
    %139 = arith.divf %137, %138 : vector<8x128xf32>
    %140 = vector.extract_strided_slice %127 {offsets = [0, 256], sizes = [8, 128], strides = [1, 1]} : vector<8x512xf32> to vector<8x128xf32>
    %141 = math.tanh %140 : vector<8x128xf32>
    %142 = vector.extract_strided_slice %127 {offsets = [0, 384], sizes = [8, 128], strides = [1, 1]} : vector<8x512xf32> to vector<8x128xf32>
    %143 = arith.negf %142 : vector<8x128xf32>
    %144 = math.exp %143 : vector<8x128xf32>
    %cst_35 = arith.constant 1.000000e+00 : f32
    %145 = vector.broadcast %cst_35 : f32 to vector<8x128xf32>
    %146 = arith.addf %145, %144 : vector<8x128xf32>
    %147 = arith.divf %145, %146 : vector<8x128xf32>
    %148 = arith.mulf %139, %121 : vector<8x128xf32>
    %149 = arith.mulf %133, %141 : vector<8x128xf32>
    %150 = arith.addf %148, %149 : vector<8x128xf32>
    %151 = math.tanh %150 : vector<8x128xf32>
    %152 = arith.mulf %147, %151 : vector<8x128xf32>
    %c32 = arith.constant 32 : index
    %c0_36 = arith.constant 0 : index
    %153 = vector.load %arg12[%c32, %c0_36] : memref<64x128xf32, #tpu.memory_space<vmem>>, vector<8x128xf32>
    tpu.vector_store %arg12[%c32, %c0_36], %152 {strides = array<i32>} : memref<64x128xf32, #tpu.memory_space<vmem>>, vector<8x128xf32>,
    %154 = vector.extract_strided_slice %5 {offsets = [40, 0], sizes = [8, 512], strides = [1, 1]} : vector<64x512xf32> to vector<8x512xf32>
    %cst_37 = arith.constant dense<0.000000e+00> : vector<8x512xf32>
    %155 = tpu.matmul %152, %6, %cst_37 {dimension_numbers = #tpu.dot_dimension_numbers<[1], [0], [0], [1], [0, 0, 1, 1], [], []>} : vector<8x128xf32>, vector<128x512xf32>, vector<8x512xf32> -> vector<8x512xf32>
    %156 = arith.addf %154, %155 : vector<8x512xf32>
    %157 = vector.extract_strided_slice %156 {offsets = [0, 0], sizes = [8, 128], strides = [1, 1]} : vector<8x512xf32> to vector<8x128xf32>
    %158 = arith.negf %157 : vector<8x128xf32>
    %159 = math.exp %158 : vector<8x128xf32>
    %cst_38 = arith.constant 1.000000e+00 : f32
    %160 = vector.broadcast %cst_38 : f32 to vector<8x128xf32>
    %161 = arith.addf %160, %159 : vector<8x128xf32>
    %162 = arith.divf %160, %161 : vector<8x128xf32>
    %163 = vector.extract_strided_slice %156 {offsets = [0, 128], sizes = [8, 128], strides = [1, 1]} : vector<8x512xf32> to vector<8x128xf32>
    %164 = arith.negf %163 : vector<8x128xf32>
    %165 = math.exp %164 : vector<8x128xf32>
    %cst_39 = arith.constant 1.000000e+00 : f32
    %166 = vector.broadcast %cst_39 : f32 to vector<8x128xf32>
    %167 = arith.addf %166, %165 : vector<8x128xf32>
    %168 = arith.divf %166, %167 : vector<8x128xf32>
    %169 = vector.extract_strided_slice %156 {offsets = [0, 256], sizes = [8, 128], strides = [1, 1]} : vector<8x512xf32> to vector<8x128xf32>
    %170 = math.tanh %169 : vector<8x128xf32>
    %171 = vector.extract_strided_slice %156 {offsets = [0, 384], sizes = [8, 128], strides = [1, 1]} : vector<8x512xf32> to vector<8x128xf32>
    %172 = arith.negf %171 : vector<8x128xf32>
    %173 = math.exp %172 : vector<8x128xf32>
    %cst_40 = arith.constant 1.000000e+00 : f32
    %174 = vector.broadcast %cst_40 : f32 to vector<8x128xf32>
    %175 = arith.addf %174, %173 : vector<8x128xf32>
    %176 = arith.divf %174, %175 : vector<8x128xf32>
    %177 = arith.mulf %168, %150 : vector<8x128xf32>
    %178 = arith.mulf %162, %170 : vector<8x128xf32>
    %179 = arith.addf %177, %178 : vector<8x128xf32>
    %180 = math.tanh %179 : vector<8x128xf32>
    %181 = arith.mulf %176, %180 : vector<8x128xf32>
    %c40 = arith.constant 40 : index
    %c0_41 = arith.constant 0 : index
    %182 = vector.load %arg12[%c40, %c0_41] : memref<64x128xf32, #tpu.memory_space<vmem>>, vector<8x128xf32>
    tpu.vector_store %arg12[%c40, %c0_41], %181 {strides = array<i32>} : memref<64x128xf32, #tpu.memory_space<vmem>>, vector<8x128xf32>,
    %183 = vector.extract_strided_slice %5 {offsets = [48, 0], sizes = [8, 512], strides = [1, 1]} : vector<64x512xf32> to vector<8x512xf32>
    %cst_42 = arith.constant dense<0.000000e+00> : vector<8x512xf32>
    %184 = tpu.matmul %181, %6, %cst_42 {dimension_numbers = #tpu.dot_dimension_numbers<[1], [0], [0], [1], [0, 0, 1, 1], [], []>} : vector<8x128xf32>, vector<128x512xf32>, vector<8x512xf32> -> vector<8x512xf32>
    %185 = arith.addf %183, %184 : vector<8x512xf32>
    %186 = vector.extract_strided_slice %185 {offsets = [0, 0], sizes = [8, 128], strides = [1, 1]} : vector<8x512xf32> to vector<8x128xf32>
    %187 = arith.negf %186 : vector<8x128xf32>
    %188 = math.exp %187 : vector<8x128xf32>
    %cst_43 = arith.constant 1.000000e+00 : f32
    %189 = vector.broadcast %cst_43 : f32 to vector<8x128xf32>
    %190 = arith.addf %189, %188 : vector<8x128xf32>
    %191 = arith.divf %189, %190 : vector<8x128xf32>
    %192 = vector.extract_strided_slice %185 {offsets = [0, 128], sizes = [8, 128], strides = [1, 1]} : vector<8x512xf32> to vector<8x128xf32>
    %193 = arith.negf %192 : vector<8x128xf32>
    %194 = math.exp %193 : vector<8x128xf32>
    %cst_44 = arith.constant 1.000000e+00 : f32
    %195 = vector.broadcast %cst_44 : f32 to vector<8x128xf32>
    %196 = arith.addf %195, %194 : vector<8x128xf32>
    %197 = arith.divf %195, %196 : vector<8x128xf32>
    %198 = vector.extract_strided_slice %185 {offsets = [0, 256], sizes = [8, 128], strides = [1, 1]} : vector<8x512xf32> to vector<8x128xf32>
    %199 = math.tanh %198 : vector<8x128xf32>
    %200 = vector.extract_strided_slice %185 {offsets = [0, 384], sizes = [8, 128], strides = [1, 1]} : vector<8x512xf32> to vector<8x128xf32>
    %201 = arith.negf %200 : vector<8x128xf32>
    %202 = math.exp %201 : vector<8x128xf32>
    %cst_45 = arith.constant 1.000000e+00 : f32
    %203 = vector.broadcast %cst_45 : f32 to vector<8x128xf32>
    %204 = arith.addf %203, %202 : vector<8x128xf32>
    %205 = arith.divf %203, %204 : vector<8x128xf32>
    %206 = arith.mulf %197, %179 : vector<8x128xf32>
    %207 = arith.mulf %191, %199 : vector<8x128xf32>
    %208 = arith.addf %206, %207 : vector<8x128xf32>
    %209 = math.tanh %208 : vector<8x128xf32>
    %210 = arith.mulf %205, %209 : vector<8x128xf32>
    %c48 = arith.constant 48 : index
    %c0_46 = arith.constant 0 : index
    %211 = vector.load %arg12[%c48, %c0_46] : memref<64x128xf32, #tpu.memory_space<vmem>>, vector<8x128xf32>
    tpu.vector_store %arg12[%c48, %c0_46], %210 {strides = array<i32>} : memref<64x128xf32, #tpu.memory_space<vmem>>, vector<8x128xf32>,
    %212 = vector.extract_strided_slice %5 {offsets = [56, 0], sizes = [8, 512], strides = [1, 1]} : vector<64x512xf32> to vector<8x512xf32>
    %cst_47 = arith.constant dense<0.000000e+00> : vector<8x512xf32>
    %213 = tpu.matmul %210, %6, %cst_47 {dimension_numbers = #tpu.dot_dimension_numbers<[1], [0], [0], [1], [0, 0, 1, 1], [], []>} : vector<8x128xf32>, vector<128x512xf32>, vector<8x512xf32> -> vector<8x512xf32>
    %214 = arith.addf %212, %213 : vector<8x512xf32>
    %215 = vector.extract_strided_slice %214 {offsets = [0, 0], sizes = [8, 128], strides = [1, 1]} : vector<8x512xf32> to vector<8x128xf32>
    %216 = arith.negf %215 : vector<8x128xf32>
    %217 = math.exp %216 : vector<8x128xf32>
    %cst_48 = arith.constant 1.000000e+00 : f32
    %218 = vector.broadcast %cst_48 : f32 to vector<8x128xf32>
    %219 = arith.addf %218, %217 : vector<8x128xf32>
    %220 = arith.divf %218, %219 : vector<8x128xf32>
    %221 = vector.extract_strided_slice %214 {offsets = [0, 128], sizes = [8, 128], strides = [1, 1]} : vector<8x512xf32> to vector<8x128xf32>
    %222 = arith.negf %221 : vector<8x128xf32>
    %223 = math.exp %222 : vector<8x128xf32>
    %cst_49 = arith.constant 1.000000e+00 : f32
    %224 = vector.broadcast %cst_49 : f32 to vector<8x128xf32>
    %225 = arith.addf %224, %223 : vector<8x128xf32>
    %226 = arith.divf %224, %225 : vector<8x128xf32>
    %227 = vector.extract_strided_slice %214 {offsets = [0, 256], sizes = [8, 128], strides = [1, 1]} : vector<8x512xf32> to vector<8x128xf32>
    %228 = math.tanh %227 : vector<8x128xf32>
    %229 = vector.extract_strided_slice %214 {offsets = [0, 384], sizes = [8, 128], strides = [1, 1]} : vector<8x512xf32> to vector<8x128xf32>
    %230 = arith.negf %229 : vector<8x128xf32>
    %231 = math.exp %230 : vector<8x128xf32>
    %cst_50 = arith.constant 1.000000e+00 : f32
    %232 = vector.broadcast %cst_50 : f32 to vector<8x128xf32>
    %233 = arith.addf %232, %231 : vector<8x128xf32>
    %234 = arith.divf %232, %233 : vector<8x128xf32>
    %235 = arith.mulf %226, %208 : vector<8x128xf32>
    %236 = arith.mulf %220, %228 : vector<8x128xf32>
    %237 = arith.addf %235, %236 : vector<8x128xf32>
    %238 = math.tanh %237 : vector<8x128xf32>
    %239 = arith.mulf %234, %238 : vector<8x128xf32>
    %c56 = arith.constant 56 : index
    %c0_51 = arith.constant 0 : index
    %240 = vector.load %arg12[%c56, %c0_51] : memref<64x128xf32, #tpu.memory_space<vmem>>, vector<8x128xf32>
    tpu.vector_store %arg12[%c56, %c0_51], %239 {strides = array<i32>} : memref<64x128xf32, #tpu.memory_space<vmem>>, vector<8x128xf32>,
    %c0_52 = arith.constant 0 : index
    %c0_53 = arith.constant 0 : index
    %241 = vector.load %arg10[%c0_52, %c0_53] : memref<8x128xf32, #tpu.memory_space<vmem>>, vector<8x128xf32>
    tpu.vector_store %arg10[%c0_52, %c0_53], %239 {strides = array<i32>} : memref<8x128xf32, #tpu.memory_space<vmem>>, vector<8x128xf32>,
    %c0_54 = arith.constant 0 : index
    %c0_55 = arith.constant 0 : index
    %242 = vector.load %arg11[%c0_54, %c0_55] : memref<8x128xf32, #tpu.memory_space<vmem>>, vector<8x128xf32>
    tpu.vector_store %arg11[%c0_54, %c0_55], %237 {strides = array<i32>} : memref<8x128xf32, #tpu.memory_space<vmem>>, vector<8x128xf32>,
    %c0_56 = arith.constant 0 : index
    %c0_57 = arith.constant 0 : index
    %243 = vector.load %arg12[%c0_56, %c0_57] : memref<64x128xf32, #tpu.memory_space<vmem>>, vector<64x128xf32>
    %244 = arith.truncf %243 : vector<64x128xf32> to vector<64x128xbf16>
    %c0_58 = arith.constant 0 : index
    %c0_59 = arith.constant 0 : index
    %245 = vector.load %arg7[%c0_58, %c0_59] : memref<128x256xbf16, #tpu.memory_space<vmem>>, vector<128x256xbf16>
    %cst_60 = arith.constant dense<0.000000e+00> : vector<64x256xf32>
    %246 = tpu.matmul %244, %245, %cst_60 {dimension_numbers = #tpu.dot_dimension_numbers<[1], [0], [0], [1], [0, 0, 1, 1], [], []>} : vector<64x128xbf16>, vector<128x256xbf16>, vector<64x256xf32> -> vector<64x256xf32>
    %c0_61 = arith.constant 0 : index
    %c0_62 = arith.constant 0 : index
    %247 = vector.load %arg8[%c0_61, %c0_62] : memref<1x256xf32, #tpu.memory_space<vmem>>, vector<1x256xf32>
    %248 = vector.broadcast %247 : vector<1x256xf32> to vector<64x256xf32>
    %249 = arith.addf %246, %248 : vector<64x256xf32>
    %250 = vector.extract_strided_slice %249 {offsets = [0, 0], sizes = [8, 256], strides = [1, 1]} : vector<64x256xf32> to vector<8x256xf32>
    %c0_63 = arith.constant 0 : index
    %c0_64 = arith.constant 0 : index
    %251 = vector.load %arg9[%c0_63, %c0_64] : memref<8x2048xf32, #tpu.memory_space<vmem>>, vector<8x256xf32>
    tpu.vector_store %arg9[%c0_63, %c0_64], %250 {strides = array<i32>} : memref<8x2048xf32, #tpu.memory_space<vmem>>, vector<8x256xf32>,
    %252 = vector.extract_strided_slice %249 {offsets = [8, 0], sizes = [8, 256], strides = [1, 1]} : vector<64x256xf32> to vector<8x256xf32>
    %c0_65 = arith.constant 0 : index
    %c256 = arith.constant 256 : index
    %253 = vector.load %arg9[%c0_65, %c256] : memref<8x2048xf32, #tpu.memory_space<vmem>>, vector<8x256xf32>
    tpu.vector_store %arg9[%c0_65, %c256], %252 {strides = array<i32>} : memref<8x2048xf32, #tpu.memory_space<vmem>>, vector<8x256xf32>,
    %254 = vector.extract_strided_slice %249 {offsets = [16, 0], sizes = [8, 256], strides = [1, 1]} : vector<64x256xf32> to vector<8x256xf32>
    %c0_66 = arith.constant 0 : index
    %c512 = arith.constant 512 : index
    %255 = vector.load %arg9[%c0_66, %c512] : memref<8x2048xf32, #tpu.memory_space<vmem>>, vector<8x256xf32>
    tpu.vector_store %arg9[%c0_66, %c512], %254 {strides = array<i32>} : memref<8x2048xf32, #tpu.memory_space<vmem>>, vector<8x256xf32>,
    %256 = vector.extract_strided_slice %249 {offsets = [24, 0], sizes = [8, 256], strides = [1, 1]} : vector<64x256xf32> to vector<8x256xf32>
    %c0_67 = arith.constant 0 : index
    %c768 = arith.constant 768 : index
    %257 = vector.load %arg9[%c0_67, %c768] : memref<8x2048xf32, #tpu.memory_space<vmem>>, vector<8x256xf32>
    tpu.vector_store %arg9[%c0_67, %c768], %256 {strides = array<i32>} : memref<8x2048xf32, #tpu.memory_space<vmem>>, vector<8x256xf32>,
    %258 = vector.extract_strided_slice %249 {offsets = [32, 0], sizes = [8, 256], strides = [1, 1]} : vector<64x256xf32> to vector<8x256xf32>
    %c0_68 = arith.constant 0 : index
    %c1024 = arith.constant 1024 : index
    %259 = vector.load %arg9[%c0_68, %c1024] : memref<8x2048xf32, #tpu.memory_space<vmem>>, vector<8x256xf32>
    tpu.vector_store %arg9[%c0_68, %c1024], %258 {strides = array<i32>} : memref<8x2048xf32, #tpu.memory_space<vmem>>, vector<8x256xf32>,
    %260 = vector.extract_strided_slice %249 {offsets = [40, 0], sizes = [8, 256], strides = [1, 1]} : vector<64x256xf32> to vector<8x256xf32>
    %c0_69 = arith.constant 0 : index
    %c1280 = arith.constant 1280 : index
    %261 = vector.load %arg9[%c0_69, %c1280] : memref<8x2048xf32, #tpu.memory_space<vmem>>, vector<8x256xf32>
    tpu.vector_store %arg9[%c0_69, %c1280], %260 {strides = array<i32>} : memref<8x2048xf32, #tpu.memory_space<vmem>>, vector<8x256xf32>,
    %262 = vector.extract_strided_slice %249 {offsets = [48, 0], sizes = [8, 256], strides = [1, 1]} : vector<64x256xf32> to vector<8x256xf32>
    %c0_70 = arith.constant 0 : index
    %c1536 = arith.constant 1536 : index
    %263 = vector.load %arg9[%c0_70, %c1536] : memref<8x2048xf32, #tpu.memory_space<vmem>>, vector<8x256xf32>
    tpu.vector_store %arg9[%c0_70, %c1536], %262 {strides = array<i32>} : memref<8x2048xf32, #tpu.memory_space<vmem>>, vector<8x256xf32>,
    %264 = vector.extract_strided_slice %249 {offsets = [56, 0], sizes = [8, 256], strides = [1, 1]} : vector<64x256xf32> to vector<8x256xf32>
    %c0_71 = arith.constant 0 : index
    %c1792 = arith.constant 1792 : index
    %265 = vector.load %arg9[%c0_71, %c1792] : memref<8x2048xf32, #tpu.memory_space<vmem>>, vector<8x256xf32>
    tpu.vector_store %arg9[%c0_71, %c1792], %264 {strides = array<i32>} : memref<8x2048xf32, #tpu.memory_space<vmem>>, vector<8x256xf32>,
    return
  }
  func.func @transform_0(%arg0: i32) -> (i32, i32) {
    %c0_i32 = arith.constant 0 : i32
    %c0_i32_0 = arith.constant 0 : i32
    %c0_i32_1 = arith.constant 0 : i32
    return %c0_i32, %c0_i32_0 : i32, i32
  }
  func.func @transform_1(%arg0: i32) -> (i32, i32) {
    %c0_i32 = arith.constant 0 : i32
    %c0_i32_0 = arith.constant 0 : i32
    %c0_i32_1 = arith.constant 0 : i32
    return %c0_i32, %c0_i32_0 : i32, i32
  }
  func.func @transform_2(%arg0: i32) -> (i32, i32) {
    %c0_i32 = arith.constant 0 : i32
    %c0_i32_0 = arith.constant 0 : i32
    %c0_i32_1 = arith.constant 0 : i32
    return %c0_i32, %c0_i32_0 : i32, i32
  }
  func.func @transform_3(%arg0: i32) -> (i32, i32) {
    %c0_i32 = arith.constant 0 : i32
    %c0_i32_0 = arith.constant 0 : i32
    %c0_i32_1 = arith.constant 0 : i32
    return %c0_i32, %c0_i32_0 : i32, i32
  }
  func.func @transform_4(%arg0: i32) -> (i32, i32) {
    %c0_i32 = arith.constant 0 : i32
    %c0_i32_0 = arith.constant 0 : i32
    %c0_i32_1 = arith.constant 0 : i32
    return %c0_i32, %c0_i32_0 : i32, i32
  }
  func.func @transform_5(%arg0: i32) -> (i32, i32) {
    %c0_i32 = arith.constant 0 : i32
    %c0_i32_0 = arith.constant 0 : i32
    %c0_i32_1 = arith.constant 0 : i32
    return %c0_i32, %c0_i32_0 : i32, i32
  }
  func.func @transform_6(%arg0: i32) -> (i32, i32) {
    %c0_i32 = arith.constant 0 : i32
    %c0_i32_0 = arith.constant 0 : i32
    %c0_i32_1 = arith.constant 0 : i32
    return %c0_i32, %c0_i32_0 : i32, i32
  }
  func.func @transform_7(%arg0: i32) -> (i32, i32) {
    %c0_i32 = arith.constant 0 : i32
    %c0_i32_0 = arith.constant 0 : i32
    %c0_i32_1 = arith.constant 0 : i32
    return %c0_i32, %c0_i32_0 : i32, i32
  }
  func.func @transform_8(%arg0: i32) -> (i32, i32) {
    %c0_i32 = arith.constant 0 : i32
    %c0_i32_0 = arith.constant 0 : i32
    %c0_i32_1 = arith.constant 0 : i32
    return %c0_i32, %c0_i32_0 : i32, i32
  }
  func.func @transform_9(%arg0: i32) -> (i32, i32) {
    %c0_i32 = arith.constant 0 : i32
    %c0_i32_0 = arith.constant 0 : i32
    %c0_i32_1 = arith.constant 0 : i32
    return %c0_i32, %c0_i32_0 : i32, i32
  }
  func.func @transform_10(%arg0: i32) -> (i32, i32) {
    %c0_i32 = arith.constant 0 : i32
    %c0_i32_0 = arith.constant 0 : i32
    %c0_i32_1 = arith.constant 0 : i32
    return %c0_i32, %c0_i32_0 : i32, i32
  }
}

</mosaic_0001>

<llo_original>
// kernel: language_model_forward.1
$region0: #{language_model_forward.1}
  #allocation0 [shape = 'u32[]', space=smem, size = 0x4, offset = 0x4, fixed_abs, tag = 'smem constant byte address 0x4 - core index']
  #allocation1 [shape = 'u32[144,128]{1,0:T(1,128)}', space=vmem, size = 0x12000, scoped, tag = 'internal scratch']
  #allocation2 [shape = 'f32[64,128]{1,0:T(8,128)}', space=vmem, size = 0x8000, scoped, tag = 'scratch operand']
  %s0 = inlined_call_operand.vmem [shape: f32[64,128], index: 0, kind: input, shape index: {}]
  %s1 = inlined_call_operand.vmem [shape: f32[128,512], index: 1, kind: input, shape index: {}]
  %s2 = inlined_call_operand.hbm [shape: f32[128,512], index: 2, kind: input, shape index: {}]
  %s3 = inlined_call_operand.vmem [shape: f32[1,512], index: 3, kind: input, shape index: {}]
  %s4 = inlined_call_operand.vmem [shape: f32[8,128], index: 4, kind: input, shape index: {}]
  %s5 = inlined_call_operand.vmem [shape: f32[8,128], index: 5, kind: input, shape index: {}]
  %s6 = inlined_call_operand.vmem [shape: bf16[128,256], index: 6, kind: input, shape index: {}]
  %s7 = inlined_call_operand.vmem [shape: f32[1,256], index: 7, kind: input, shape index: {}]
  %s8 = inlined_call_operand.vmem [shape: f32[8,2048], index: 8, kind: output, shape index: {0}]
  %s9 = inlined_call_operand.hbm [shape: f32[8,128], index: 9, kind: output, shape index: {1}]
  %s10 = inlined_call_operand.hbm [shape: f32[8,128], index: 10, kind: output, shape index: {2}]
  %11 = xla_tuple %s8, %s9, %s10
  %s12 = sld [smem:[#allocation0]]
  $region62: #{language_model_forward.1} parent=0
    _
  %s14 = ssub.s32 1, %s12
  %s15 = scalar_select 0, %s14, %s12
  $region1: #{language_model_forward.1} parent=0
    #allocation3 [shape = 'u8[262144]{0}', space=vmem, size = 0x40000, scoped, tag = 'input window, operand 2, single buffered']
    #allocation4 [shape = 's32[1]{0}', space=sflag, size = 0x4, scoped, tag = 'scoped memory for language_model_forward.1']
    #allocation5 [shape = 's32[1]{0}', space=sflag, size = 0x4, scoped, tag = 'scoped memory for language_model_forward.1']
    #allocation6 [shape = 'u8[4096]{0}', space=vmem, size = 0x1000, scoped, tag = 'output window, operand 1, single buffered']
    #allocation7 [shape = 'u8[4096]{0}', space=vmem, size = 0x1000, scoped, tag = 'output window, operand 2, single buffered']
    #allocation8 [shape = 's32[1]{0}', space=sflag, size = 0x4, scoped, tag = 'scoped memory for language_model_forward.1']
    %16 = vsyncpa [#allocation4], 0
    %17 = vsyncpa [#allocation5], 0
    %18 = vsyncpa [#allocation8], 0
    // Predicated region
    $region2: #{language_model_forward.1} parent=1 // pred_check
      _
    $region3: #{language_model_forward.1} parent=1 // pred_check_branch
      %20 = sbr.rel (0) target = $region5
    $region4: #{language_model_forward.1} parent=1 // pred_region
      _
    $region5: #{language_model_forward.1} parent=1 // pred_fallthru
      _
    // Predicated region
    $region6: #{language_model_forward.1} parent=1 // pred_check
      _
    $region7: #{language_model_forward.1} parent=1 // pred_check_branch
      %22 = sbr.rel (0) target = $region9
    $region8: #{language_model_forward.1} parent=1 // pred_region
      _
    $region9: #{language_model_forward.1} parent=1 // pred_fallthru
      _
    // Predicated region
    $region10: #{language_model_forward.1} parent=1 // pred_check
      _
    $region11: #{language_model_forward.1} parent=1 // pred_check_branch
      %24 = sbr.rel (0) target = $region13
    $region12: #{language_model_forward.1} parent=1 // pred_region
      %s26 = ssub.s32 8192, 8192
      %27 = vsyncadd [#allocation4], %s26
      %s28 = sshll.u32 [#allocation3], 4
      %s29 = int_to_ptr.vmem [resolvable:$true] %s28
      %34 = dma.hbm_to_vmem [thread:$0]  %s2, 8192, %s29, [#allocation4], 512, 512, 32
    $region13: #{language_model_forward.1} parent=1 // pred_fallthru
      _
    // Predicated region
    $region14: #{language_model_forward.1} parent=1 // pred_check
      _
    $region15: #{language_model_forward.1} parent=1 // pred_check_branch
      %36 = sbr.rel (0) target = $region17
    $region16: #{language_model_forward.1} parent=1 // pred_region
      _
    $region17: #{language_model_forward.1} parent=1 // pred_fallthru
      _
    // Predicated region
    $region18: #{language_model_forward.1} parent=1 // pred_check
      _
    $region19: #{language_model_forward.1} parent=1 // pred_check_branch
      %38 = sbr.rel (0) target = $region21
    $region20: #{language_model_forward.1} parent=1 // pred_region
      _
    $region21: #{language_model_forward.1} parent=1 // pred_fallthru
      _
    // Predicated region
    $region22: #{language_model_forward.1} parent=1 // pred_check
      _
    $region23: #{language_model_forward.1} parent=1 // pred_check_branch
      %40 = sbr.rel (0) target = $region25
    $region24: #{language_model_forward.1} parent=1 // pred_region
      _
    $region25: #{language_model_forward.1} parent=1 // pred_fallthru
      _
    // Predicated region
    $region26: #{language_model_forward.1} parent=1 // pred_check
      _
    $region27: #{language_model_forward.1} parent=1 // pred_check_branch
      %42 = sbr.rel (0) target = $region29
    $region28: #{language_model_forward.1} parent=1 // pred_region
      _
    $region29: #{language_model_forward.1} parent=1 // pred_fallthru
      _
    // Predicated region
    $region30: #{language_model_forward.1} parent=1 // pred_check
      _
    $region31: #{language_model_forward.1} parent=1 // pred_check_branch
      %44 = sbr.rel (0) target = $region33
    $region32: #{language_model_forward.1} parent=1 // pred_region
      _
    $region33: #{language_model_forward.1} parent=1 // pred_fallthru
      _
    // Predicated region
    $region34: #{language_model_forward.1} parent=1 // pred_check
      _
    $region35: #{language_model_forward.1} parent=1 // pred_check_branch
      %46 = sbr.rel (0) target = $region37
    $region36: #{language_model_forward.1} parent=1 // pred_region
      %47 = dma.done [#allocation4], 8192
    $region37: #{language_model_forward.1} parent=1 // pred_fallthru
      _
    %v49 = vld [vmem:[%s0] sm:$0xff]
    %v50 = vld [vmem:[%s0 + $0x8] sm:$0xff]
    %v51 = vld [vmem:[%s0 + $0x10] sm:$0xff]
    %v52 = vld [vmem:[%s0 + $0x18] sm:$0xff]
    %v53 = vld [vmem:[%s0 + $0x20] sm:$0xff]
    %v54 = vld [vmem:[%s0 + $0x28] sm:$0xff]
    %v55 = vld [vmem:[%s0 + $0x30] sm:$0xff]
    %v56 = vld [vmem:[%s0 + $0x38] sm:$0xff]
    %v57 = vld [vmem:[%s1] sm:$0xff]
    %v58 = vld [vmem:[%s1 + $0x8] sm:$0xff]
    %v59 = vld [vmem:[%s1 + $0x10] sm:$0xff]
    %v60 = vld [vmem:[%s1 + $0x18] sm:$0xff]
    %v61 = vld [vmem:[%s1 + $0x20] sm:$0xff]
    %v62 = vld [vmem:[%s1 + $0x28] sm:$0xff]
    %v63 = vld [vmem:[%s1 + $0x30] sm:$0xff]
    %v64 = vld [vmem:[%s1 + $0x38] sm:$0xff]
    %v65 = vld [vmem:[%s1 + $0x40] sm:$0xff]
    %v66 = vld [vmem:[%s1 + $0x48] sm:$0xff]
    %v67 = vld [vmem:[%s1 + $0x50] sm:$0xff]
    %v68 = vld [vmem:[%s1 + $0x58] sm:$0xff]
    %v69 = vld [vmem:[%s1 + $0x60] sm:$0xff]
    %v70 = vld [vmem:[%s1 + $0x68] sm:$0xff]
    %v71 = vld [vmem:[%s1 + $0x70] sm:$0xff]
    %v72 = vld [vmem:[%s1 + $0x78] sm:$0xff]
    %v73 = vld [vmem:[%s1 + $0x80] sm:$0xff]
    %v74 = vld [vmem:[%s1 + $0x88] sm:$0xff]
    %v75 = vld [vmem:[%s1 + $0x90] sm:$0xff]
    %v76 = vld [vmem:[%s1 + $0x98] sm:$0xff]
    %v77 = vld [vmem:[%s1 + $0xa0] sm:$0xff]
    %v78 = vld [vmem:[%s1 + $0xa8] sm:$0xff]
    %v79 = vld [vmem:[%s1 + $0xb0] sm:$0xff]
    %v80 = vld [vmem:[%s1 + $0xb8] sm:$0xff]
    %v81 = vld [vmem:[%s1 + $0xc0] sm:$0xff]
    %v82 = vld [vmem:[%s1 + $0xc8] sm:$0xff]
    %v83 = vld [vmem:[%s1 + $0xd0] sm:$0xff]
    %v84 = vld [vmem:[%s1 + $0xd8] sm:$0xff]
    %v85 = vld [vmem:[%s1 + $0xe0] sm:$0xff]
    %v86 = vld [vmem:[%s1 + $0xe8] sm:$0xff]
    %v87 = vld [vmem:[%s1 + $0xf0] sm:$0xff]
    %v88 = vld [vmem:[%s1 + $0xf8] sm:$0xff]
    %v89 = vld [vmem:[%s1 + $0x100] sm:$0xff]
    %v90 = vld [vmem:[%s1 + $0x108] sm:$0xff]
    %v91 = vld [vmem:[%s1 + $0x110] sm:$0xff]
    %v92 = vld [vmem:[%s1 + $0x118] sm:$0xff]
    %v93 = vld [vmem:[%s1 + $0x120] sm:$0xff]
    %v94 = vld [vmem:[%s1 + $0x128] sm:$0xff]
    %v95 = vld [vmem:[%s1 + $0x130] sm:$0xff]
    %v96 = vld [vmem:[%s1 + $0x138] sm:$0xff]
    %v97 = vld [vmem:[%s1 + $0x140] sm:$0xff]
    %v98 = vld [vmem:[%s1 + $0x148] sm:$0xff]
    %v99 = vld [vmem:[%s1 + $0x150] sm:$0xff]
    %v100 = vld [vmem:[%s1 + $0x158] sm:$0xff]
    %v101 = vld [vmem:[%s1 + $0x160] sm:$0xff]
    %v102 = vld [vmem:[%s1 + $0x168] sm:$0xff]
    %v103 = vld [vmem:[%s1 + $0x170] sm:$0xff]
    %v104 = vld [vmem:[%s1 + $0x178] sm:$0xff]
    %v105 = vld [vmem:[%s1 + $0x180] sm:$0xff]
    %v106 = vld [vmem:[%s1 + $0x188] sm:$0xff]
    %v107 = vld [vmem:[%s1 + $0x190] sm:$0xff]
    %v108 = vld [vmem:[%s1 + $0x198] sm:$0xff]
    %v109 = vld [vmem:[%s1 + $0x1a0] sm:$0xff]
    %v110 = vld [vmem:[%s1 + $0x1a8] sm:$0xff]
    %v111 = vld [vmem:[%s1 + $0x1b0] sm:$0xff]
    %v112 = vld [vmem:[%s1 + $0x1b8] sm:$0xff]
    %v113 = vld [vmem:[%s1 + $0x1c0] sm:$0xff]
    %v114 = vld [vmem:[%s1 + $0x1c8] sm:$0xff]
    %v115 = vld [vmem:[%s1 + $0x1d0] sm:$0xff]
    %v116 = vld [vmem:[%s1 + $0x1d8] sm:$0xff]
    %v117 = vld [vmem:[%s1 + $0x1e0] sm:$0xff]
    %v118 = vld [vmem:[%s1 + $0x1e8] sm:$0xff]
    %v119 = vld [vmem:[%s1 + $0x1f0] sm:$0xff]
    %v120 = vld [vmem:[%s1 + $0x1f8] sm:$0xff]
    %v121 = vld [vmem:[%s3] sm:$0xf]
    %v123 = vlaneseq
    %v124 = vshrl.u32 %v123, 7
    %v125 = vsub.s32 0, %v124
    %v126 = vrot.slane %v121, %v125
    %v127 = vlaneseq
    %v128 = vshrl.u32 %v127, 7
    %v129 = vsub.s32 1, %v128
    %v130 = vrot.slane %v121, %v129
    %v131 = vlaneseq
    %v132 = vshrl.u32 %v131, 7
    %v133 = vsub.s32 2, %v132
    %v134 = vrot.slane %v121, %v133
    %v135 = vlaneseq
    %v136 = vshrl.u32 %v135, 7
    %v137 = vsub.s32 3, %v136
    %v138 = vrot.slane %v121, %v137
    %143 = vmatprep.subr.mxu0 %v58
    %144 = vmatpush1.msra.mxu0 %v57
    %145 = vmatprep.subr.mxu0 %v62
    %146 = vmatpush1.msra.mxu0 %v61
    %147 = vmatprep.subr.mxu0 %v66
    %148 = vmatpush1.msra.mxu0 %v65
    %149 = vmatprep.subr.mxu0 %v70
    %150 = vmatpush1.msra.mxu0 %v69
    %151 = vmatprep.subr.mxu0 %v74
    %152 = vmatpush1.msra.mxu0 %v73
    %153 = vmatprep.subr.mxu0 %v78
    %154 = vmatpush1.msra.mxu0 %v77
    %155 = vmatprep.subr.mxu0 %v82
    %156 = vmatpush1.msra.mxu0 %v81
    %157 = vmatprep.subr.mxu0 %v86
    %158 = vmatpush1.msra.mxu0 %v85
    %159 = vmatprep.subr.mxu0 %v90
    %160 = vmatpush1.msra.mxu0 %v89
    %161 = vmatprep.subr.mxu0 %v94
    %162 = vmatpush1.msra.mxu0 %v93
    %163 = vmatprep.subr.mxu0 %v98
    %164 = vmatpush1.msra.mxu0 %v97
    %165 = vmatprep.subr.mxu0 %v102
    %166 = vmatpush1.msra.mxu0 %v101
    %167 = vmatprep.subr.mxu0 %v106
    %168 = vmatpush1.msra.mxu0 %v105
    %169 = vmatprep.subr.mxu0 %v110
    %170 = vmatpush1.msra.mxu0 %v109
    %171 = vmatprep.subr.mxu0 %v114
    %172 = vmatpush1.msra.mxu0 %v113
    %173 = vmatprep.subr.mxu0 %v118
    %174 = vmatpush1.msra.mxu0 %v117
    %175 = vmatprep.subr.mxu0 0.0
    %176 = vmatpush1.msra.mxu0 0.0
    %177 = vmatprep.subr.mxu0 0.0
    %178 = vmatpush1.msra.mxu0 0.0
    %179 = vmatprep.subr.mxu0 0.0
    %180 = vmatpush1.msra.mxu0 0.0
    %181 = vmatprep.subr.mxu0 0.0
    %182 = vmatpush1.msra.mxu0 0.0
    %183 = vmatprep.subr.mxu0 0.0
    %184 = vmatpush1.msra.mxu0 0.0
    %185 = vmatprep.subr.mxu0 0.0
    %186 = vmatpush1.msra.mxu0 0.0
    %187 = vmatprep.subr.mxu0 0.0
    %188 = vmatpush1.msra.mxu0 0.0
    %189 = vmatprep.subr.mxu0 0.0
    %190 = vmatpush1.msra.mxu0 0.0
    %191 = vmatprep.subr.mxu0 0.0
    %192 = vmatpush1.msra.mxu0 0.0
    %193 = vmatprep.subr.mxu0 0.0
    %194 = vmatpush1.msra.mxu0 0.0
    %195 = vmatprep.subr.mxu0 0.0
    %196 = vmatpush1.msra.mxu0 0.0
    %197 = vmatprep.subr.mxu0 0.0
    %198 = vmatpush1.msra.mxu0 0.0
    %199 = vmatprep.subr.mxu0 0.0
    %200 = vmatpush1.msra.mxu0 0.0
    %201 = vmatprep.subr.mxu0 0.0
    %202 = vmatpush1.msra.mxu0 0.0
    %203 = vmatprep.subr.mxu0 0.0
    %204 = vmatpush1.msra.mxu0 0.0
    %205 = vmatprep.subr.mxu0 0.0
    %206 = vmatpush1.msra.mxu0 0.0
    %207 = vmatprep.mubr.f32.mxu0 0.0
    %208 = vmatmul.mubr.f32.gmra.mrb[0].mxu0 %v49
    %v209 = vpop.f32.mrb[0].mxu0
    %v210 = vadd.f32 %v126, %v209
    %v211 = vpop.f32.mrb[0].mxu0
    %v212 = vadd.f32 %v130, %v211
    %213 = vmatprep.mubr.f32.mxu0 0.0
    %214 = vmatmul.mubr.f32.gmra.mrb[0].mxu0 %v50
    %v215 = vpop.f32.mrb[0].mxu0
    %v216 = vadd.f32 %v126, %v215
    %v217 = vpop.f32.mrb[0].mxu0
    %v218 = vadd.f32 %v130, %v217
    %219 = vmatprep.mubr.f32.mxu0 0.0
    %220 = vmatmul.mubr.f32.gmra.mrb[0].mxu0 %v51
    %v221 = vpop.f32.mrb[0].mxu0
    %v222 = vadd.f32 %v126, %v221
    %v223 = vpop.f32.mrb[0].mxu0
    %v224 = vadd.f32 %v130, %v223
    %225 = vmatprep.mubr.f32.mxu0 0.0
    %226 = vmatmul.mubr.f32.gmra.mrb[0].mxu0 %v52
    %v227 = vpop.f32.mrb[0].mxu0
    %v228 = vadd.f32 %v126, %v227
    %v229 = vpop.f32.mrb[0].mxu0
    %v230 = vadd.f32 %v130, %v229
    %231 = vmatprep.mubr.f32.mxu0 0.0
    %232 = vmatmul.mubr.f32.gmra.mrb[0].mxu0 %v53
    %v233 = vpop.f32.mrb[0].mxu0
    %v234 = vadd.f32 %v126, %v233
    %v235 = vpop.f32.mrb[0].mxu0
    %v236 = vadd.f32 %v130, %v235
    %237 = vmatprep.mubr.f32.mxu0 0.0
    %238 = vmatmul.mubr.f32.gmra.mrb[0].mxu0 %v54
    %v239 = vpop.f32.mrb[0].mxu0
    %v240 = vadd.f32 %v126, %v239
    %v241 = vpop.f32.mrb[0].mxu0
    %v242 = vadd.f32 %v130, %v241
    %243 = vmatprep.mubr.f32.mxu0 0.0
    %244 = vmatmul.mubr.f32.gmra.mrb[0].mxu0 %v55
    %v245 = vpop.f32.mrb[0].mxu0
    %v246 = vadd.f32 %v126, %v245
    %v247 = vpop.f32.mrb[0].mxu0
    %v248 = vadd.f32 %v130, %v247
    %249 = vmatprep.mubr.f32.mxu0 0.0
    %250 = vmatmul.mubr.f32.gmra.mrb[0].mxu0 %v56
    %v251 = vpop.f32.mrb[0].mxu0
    %v252 = vadd.f32 %v126, %v251
    %v253 = vpop.f32.mrb[0].mxu0
    %v254 = vadd.f32 %v130, %v253
    %255 = vdwg.mxu0
    %256 = vmatprep.subr.mxu0 %v60
    %257 = vmatpush1.msra.mxu0 %v59
    %258 = vmatprep.subr.mxu0 %v64
    %259 = vmatpush1.msra.mxu0 %v63
    %260 = vmatprep.subr.mxu0 %v68
    %261 = vmatpush1.msra.mxu0 %v67
    %262 = vmatprep.subr.mxu0 %v72
    %263 = vmatpush1.msra.mxu0 %v71
    %264 = vmatprep.subr.mxu0 %v76
    %265 = vmatpush1.msra.mxu0 %v75
    %266 = vmatprep.subr.mxu0 %v80
    %267 = vmatpush1.msra.mxu0 %v79
    %268 = vmatprep.subr.mxu0 %v84
    %269 = vmatpush1.msra.mxu0 %v83
    %270 = vmatprep.subr.mxu0 %v88
    %271 = vmatpush1.msra.mxu0 %v87
    %272 = vmatprep.subr.mxu0 %v92
    %273 = vmatpush1.msra.mxu0 %v91
    %274 = vmatprep.subr.mxu0 %v96
    %275 = vmatpush1.msra.mxu0 %v95
    %276 = vmatprep.subr.mxu0 %v100
    %277 = vmatpush1.msra.mxu0 %v99
    %278 = vmatprep.subr.mxu0 %v104
    %279 = vmatpush1.msra.mxu0 %v103
    %280 = vmatprep.subr.mxu0 %v108
    %281 = vmatpush1.msra.mxu0 %v107
    %282 = vmatprep.subr.mxu0 %v112
    %283 = vmatpush1.msra.mxu0 %v111
    %284 = vmatprep.subr.mxu0 %v116
    %285 = vmatpush1.msra.mxu0 %v115
    %286 = vmatprep.subr.mxu0 %v120
    %287 = vmatpush1.msra.mxu0 %v119
    %288 = vmatprep.subr.mxu0 0.0
    %289 = vmatpush1.msra.mxu0 0.0
    %290 = vmatprep.subr.mxu0 0.0
    %291 = vmatpush1.msra.mxu0 0.0
    %292 = vmatprep.subr.mxu0 0.0
    %293 = vmatpush1.msra.mxu0 0.0
    %294 = vmatprep.subr.mxu0 0.0
    %295 = vmatpush1.msra.mxu0 0.0
    %296 = vmatprep.subr.mxu0 0.0
    %297 = vmatpush1.msra.mxu0 0.0
    %298 = vmatprep.subr.mxu0 0.0
    %299 = vmatpush1.msra.mxu0 0.0
    %300 = vmatprep.subr.mxu0 0.0
    %301 = vmatpush1.msra.mxu0 0.0
    %302 = vmatprep.subr.mxu0 0.0
    %303 = vmatpush1.msra.mxu0 0.0
    %304 = vmatprep.subr.mxu0 0.0
    %305 = vmatpush1.msra.mxu0 0.0
    %306 = vmatprep.subr.mxu0 0.0
    %307 = vmatpush1.msra.mxu0 0.0
    %308 = vmatprep.subr.mxu0 0.0
    %309 = vmatpush1.msra.mxu0 0.0
    %310 = vmatprep.subr.mxu0 0.0
    %311 = vmatpush1.msra.mxu0 0.0
    %312 = vmatprep.subr.mxu0 0.0
    %313 = vmatpush1.msra.mxu0 0.0
    %314 = vmatprep.subr.mxu0 0.0
    %315 = vmatpush1.msra.mxu0 0.0
    %316 = vmatprep.subr.mxu0 0.0
    %317 = vmatpush1.msra.mxu0 0.0
    %318 = vmatprep.subr.mxu0 0.0
    %319 = vmatpush1.msra.mxu0 0.0
    %320 = vmatprep.mubr.f32.mxu0 0.0
    %321 = vmatmul.mubr.f32.gmra.mrb[0].mxu0 %v49
    %v322 = vpop.f32.mrb[0].mxu0
    %v323 = vadd.f32 %v134, %v322
    %v324 = vpop.f32.mrb[0].mxu0
    %v325 = vadd.f32 %v138, %v324
    %326 = vmatprep.mubr.f32.mxu0 0.0
    %327 = vmatmul.mubr.f32.gmra.mrb[0].mxu0 %v50
    %v328 = vpop.f32.mrb[0].mxu0
    %v329 = vadd.f32 %v134, %v328
    %v330 = vpop.f32.mrb[0].mxu0
    %v331 = vadd.f32 %v138, %v330
    %332 = vmatprep.mubr.f32.mxu0 0.0
    %333 = vmatmul.mubr.f32.gmra.mrb[0].mxu0 %v51
    %v334 = vpop.f32.mrb[0].mxu0
    %v335 = vadd.f32 %v134, %v334
    %v336 = vpop.f32.mrb[0].mxu0
    %v337 = vadd.f32 %v138, %v336
    %338 = vmatprep.mubr.f32.mxu0 0.0
    %339 = vmatmul.mubr.f32.gmra.mrb[0].mxu0 %v52
    %v340 = vpop.f32.mrb[0].mxu0
    %v341 = vadd.f32 %v134, %v340
    %v342 = vpop.f32.mrb[0].mxu0
    %v343 = vadd.f32 %v138, %v342
    %344 = vmatprep.mubr.f32.mxu0 0.0
    %345 = vmatmul.mubr.f32.gmra.mrb[0].mxu0 %v53
    %v346 = vpop.f32.mrb[0].mxu0
    %v347 = vadd.f32 %v134, %v346
    %v348 = vpop.f32.mrb[0].mxu0
    %v349 = vadd.f32 %v138, %v348
    %350 = vmatprep.mubr.f32.mxu0 0.0
    %351 = vmatmul.mubr.f32.gmra.mrb[0].mxu0 %v54
    %v352 = vpop.f32.mrb[0].mxu0
    %v353 = vadd.f32 %v134, %v352
    %v354 = vpop.f32.mrb[0].mxu0
    %v355 = vadd.f32 %v138, %v354
    %356 = vmatprep.mubr.f32.mxu0 0.0
    %357 = vmatmul.mubr.f32.gmra.mrb[0].mxu0 %v55
    %v358 = vpop.f32.mrb[0].mxu0
    %v359 = vadd.f32 %v134, %v358
    %v360 = vpop.f32.mrb[0].mxu0
    %v361 = vadd.f32 %v138, %v360
    %362 = vmatprep.mubr.f32.mxu0 0.0
    %363 = vmatmul.mubr.f32.gmra.mrb[0].mxu0 %v56
    %v364 = vpop.f32.mrb[0].mxu0
    %v365 = vadd.f32 %v134, %v364
    %v366 = vpop.f32.mrb[0].mxu0
    %v367 = vadd.f32 %v138, %v366
    %368 = vdwg.mxu0
    %v369 = vld [vmem:[#allocation3] sm:$0xff]
    %v370 = vld [vmem:[#allocation3 + $0x8] sm:$0xff]
    %v371 = vld [vmem:[#allocation3 + $0x10] sm:$0xff]
    %v372 = vld [vmem:[#allocation3 + $0x18] sm:$0xff]
    %v373 = vld [vmem:[#allocation3 + $0x20] sm:$0xff]
    %v374 = vld [vmem:[#allocation3 + $0x28] sm:$0xff]
    %v375 = vld [vmem:[#allocation3 + $0x30] sm:$0xff]
    %v376 = vld [vmem:[#allocation3 + $0x38] sm:$0xff]
    %v377 = vld [vmem:[#allocation3 + $0x40] sm:$0xff]
    %v378 = vld [vmem:[#allocation3 + $0x48] sm:$0xff]
    %v379 = vld [vmem:[#allocation3 + $0x50] sm:$0xff]
    %v380 = vld [vmem:[#allocation3 + $0x58] sm:$0xff]
    %v381 = vld [vmem:[#allocation3 + $0x60] sm:$0xff]
    %v382 = vld [vmem:[#allocation3 + $0x68] sm:$0xff]
    %v383 = vld [vmem:[#allocation3 + $0x70] sm:$0xff]
    %v384 = vld [vmem:[#allocation3 + $0x78] sm:$0xff]
    %v385 = vld [vmem:[#allocation3 + $0x80] sm:$0xff]
    %v386 = vld [vmem:[#allocation3 + $0x88] sm:$0xff]
    %v387 = vld [vmem:[#allocation3 + $0x90] sm:$0xff]
    %v388 = vld [vmem:[#allocation3 + $0x98] sm:$0xff]
    %v389 = vld [vmem:[#allocation3 + $0xa0] sm:$0xff]
    %v390 = vld [vmem:[#allocation3 + $0xa8] sm:$0xff]
    %v391 = vld [vmem:[#allocation3 + $0xb0] sm:$0xff]
    %v392 = vld [vmem:[#allocation3 + $0xb8] sm:$0xff]
    %v393 = vld [vmem:[#allocation3 + $0xc0] sm:$0xff]
    %v394 = vld [vmem:[#allocation3 + $0xc8] sm:$0xff]
    %v395 = vld [vmem:[#allocation3 + $0xd0] sm:$0xff]
    %v396 = vld [vmem:[#allocation3 + $0xd8] sm:$0xff]
    %v397 = vld [vmem:[#allocation3 + $0xe0] sm:$0xff]
    %v398 = vld [vmem:[#allocation3 + $0xe8] sm:$0xff]
    %v399 = vld [vmem:[#allocation3 + $0xf0] sm:$0xff]
    %v400 = vld [vmem:[#allocation3 + $0xf8] sm:$0xff]
    %v401 = vld [vmem:[#allocation3 + $0x100] sm:$0xff]
    %v402 = vld [vmem:[#allocation3 + $0x108] sm:$0xff]
    %v403 = vld [vmem:[#allocation3 + $0x110] sm:$0xff]
    %v404 = vld [vmem:[#allocation3 + $0x118] sm:$0xff]
    %v405 = vld [vmem:[#allocation3 + $0x120] sm:$0xff]
    %v406 = vld [vmem:[#allocation3 + $0x128] sm:$0xff]
    %v407 = vld [vmem:[#allocation3 + $0x130] sm:$0xff]
    %v408 = vld [vmem:[#allocation3 + $0x138] sm:$0xff]
    %v409 = vld [vmem:[#allocation3 + $0x140] sm:$0xff]
    %v410 = vld [vmem:[#allocation3 + $0x148] sm:$0xff]
    %v411 = vld [vmem:[#allocation3 + $0x150] sm:$0xff]
    %v412 = vld [vmem:[#allocation3 + $0x158] sm:$0xff]
    %v413 = vld [vmem:[#allocation3 + $0x160] sm:$0xff]
    %v414 = vld [vmem:[#allocation3 + $0x168] sm:$0xff]
    %v415 = vld [vmem:[#allocation3 + $0x170] sm:$0xff]
    %v416 = vld [vmem:[#allocation3 + $0x178] sm:$0xff]
    %v417 = vld [vmem:[#allocation3 + $0x180] sm:$0xff]
    %v418 = vld [vmem:[#allocation3 + $0x188] sm:$0xff]
    %v419 = vld [vmem:[#allocation3 + $0x190] sm:$0xff]
    %v420 = vld [vmem:[#allocation3 + $0x198] sm:$0xff]
    %v421 = vld [vmem:[#allocation3 + $0x1a0] sm:$0xff]
    %v422 = vld [vmem:[#allocation3 + $0x1a8] sm:$0xff]
    %v423 = vld [vmem:[#allocation3 + $0x1b0] sm:$0xff]
    %v424 = vld [vmem:[#allocation3 + $0x1b8] sm:$0xff]
    %v425 = vld [vmem:[#allocation3 + $0x1c0] sm:$0xff]
    %v426 = vld [vmem:[#allocation3 + $0x1c8] sm:$0xff]
    %v427 = vld [vmem:[#allocation3 + $0x1d0] sm:$0xff]
    %v428 = vld [vmem:[#allocation3 + $0x1d8] sm:$0xff]
    %v429 = vld [vmem:[#allocation3 + $0x1e0] sm:$0xff]
    %v430 = vld [vmem:[#allocation3 + $0x1e8] sm:$0xff]
    %v431 = vld [vmem:[#allocation3 + $0x1f0] sm:$0xff]
    %v432 = vld [vmem:[#allocation3 + $0x1f8] sm:$0xff]
    %v433 = vld [vmem:[%s4] sm:$0xff]
    %v434 = vld [vmem:[%s5] sm:$0xff]
    %435 = vmatprep.subr.mxu0 %v370
    %436 = vmatpush1.msra.mxu0 %v369
    %437 = vmatprep.subr.mxu0 %v374
    %438 = vmatpush1.msra.mxu0 %v373
    %439 = vmatprep.subr.mxu0 %v378
    %440 = vmatpush1.msra.mxu0 %v377
    %441 = vmatprep.subr.mxu0 %v382
    %442 = vmatpush1.msra.mxu0 %v381
    %443 = vmatprep.subr.mxu0 %v386
    %444 = vmatpush1.msra.mxu0 %v385
    %445 = vmatprep.subr.mxu0 %v390
    %446 = vmatpush1.msra.mxu0 %v389
    %447 = vmatprep.subr.mxu0 %v394
    %448 = vmatpush1.msra.mxu0 %v393
    %449 = vmatprep.subr.mxu0 %v398
    %450 = vmatpush1.msra.mxu0 %v397
    %451 = vmatprep.subr.mxu0 %v402
    %452 = vmatpush1.msra.mxu0 %v401
    %453 = vmatprep.subr.mxu0 %v406
    %454 = vmatpush1.msra.mxu0 %v405
    %455 = vmatprep.subr.mxu0 %v410
    %456 = vmatpush1.msra.mxu0 %v409
    %457 = vmatprep.subr.mxu0 %v414
    %458 = vmatpush1.msra.mxu0 %v413
    %459 = vmatprep.subr.mxu0 %v418
    %460 = vmatpush1.msra.mxu0 %v417
    %461 = vmatprep.subr.mxu0 %v422
    %462 = vmatpush1.msra.mxu0 %v421
    %463 = vmatprep.subr.mxu0 %v426
    %464 = vmatpush1.msra.mxu0 %v425
    %465 = vmatprep.subr.mxu0 %v430
    %466 = vmatpush1.msra.mxu0 %v429
    %467 = vmatprep.subr.mxu0 0.0
    %468 = vmatpush1.msra.mxu0 0.0
    %469 = vmatprep.subr.mxu0 0.0
    %470 = vmatpush1.msra.mxu0 0.0
    %471 = vmatprep.subr.mxu0 0.0
    %472 = vmatpush1.msra.mxu0 0.0
    %473 = vmatprep.subr.mxu0 0.0
    %474 = vmatpush1.msra.mxu0 0.0
    %475 = vmatprep.subr.mxu0 0.0
    %476 = vmatpush1.msra.mxu0 0.0
    %477 = vmatprep.subr.mxu0 0.0
    %478 = vmatpush1.msra.mxu0 0.0
    %479 = vmatprep.subr.mxu0 0.0
    %480 = vmatpush1.msra.mxu0 0.0
    %481 = vmatprep.subr.mxu0 0.0
    %482 = vmatpush1.msra.mxu0 0.0
    %483 = vmatprep.subr.mxu0 0.0
    %484 = vmatpush1.msra.mxu0 0.0
    %485 = vmatprep.subr.mxu0 0.0
    %486 = vmatpush1.msra.mxu0 0.0
    %487 = vmatprep.subr.mxu0 0.0
    %488 = vmatpush1.msra.mxu0 0.0
    %489 = vmatprep.subr.mxu0 0.0
    %490 = vmatpush1.msra.mxu0 0.0
    %491 = vmatprep.subr.mxu0 0.0
    %492 = vmatpush1.msra.mxu0 0.0
    %493 = vmatprep.subr.mxu0 0.0
    %494 = vmatpush1.msra.mxu0 0.0
    %495 = vmatprep.subr.mxu0 0.0
    %496 = vmatpush1.msra.mxu0 0.0
    %497 = vmatprep.subr.mxu0 0.0
    %498 = vmatpush1.msra.mxu0 0.0
    %499 = vmatprep.mubr.f32.mxu0 0.0
    %500 = vmatmul.mubr.f32.gmra.mrb[0].mxu0 %v433
    %v501 = vpop.f32.mrb[0].mxu0
    %v502 = vadd.f32 0.0, %v501
    %v503 = vpop.f32.mrb[0].mxu0
    %v504 = vadd.f32 0.0, %v503
    %505 = vdwg.mxu0
    %506 = vmatprep.subr.mxu0 %v372
    %507 = vmatpush1.msra.mxu0 %v371
    %508 = vmatprep.subr.mxu0 %v376
    %509 = vmatpush1.msra.mxu0 %v375
    %510 = vmatprep.subr.mxu0 %v380
    %511 = vmatpush1.msra.mxu0 %v379
    %512 = vmatprep.subr.mxu0 %v384
    %513 = vmatpush1.msra.mxu0 %v383
    %514 = vmatprep.subr.mxu0 %v388
    %515 = vmatpush1.msra.mxu0 %v387
    %516 = vmatprep.subr.mxu0 %v392
    %517 = vmatpush1.msra.mxu0 %v391
    %518 = vmatprep.subr.mxu0 %v396
    %519 = vmatpush1.msra.mxu0 %v395
    %520 = vmatprep.subr.mxu0 %v400
    %521 = vmatpush1.msra.mxu0 %v399
    %522 = vmatprep.subr.mxu0 %v404
    %523 = vmatpush1.msra.mxu0 %v403
    %524 = vmatprep.subr.mxu0 %v408
    %525 = vmatpush1.msra.mxu0 %v407
    %526 = vmatprep.subr.mxu0 %v412
    %527 = vmatpush1.msra.mxu0 %v411
    %528 = vmatprep.subr.mxu0 %v416
    %529 = vmatpush1.msra.mxu0 %v415
    %530 = vmatprep.subr.mxu0 %v420
    %531 = vmatpush1.msra.mxu0 %v419
    %532 = vmatprep.subr.mxu0 %v424
    %533 = vmatpush1.msra.mxu0 %v423
    %534 = vmatprep.subr.mxu0 %v428
    %535 = vmatpush1.msra.mxu0 %v427
    %536 = vmatprep.subr.mxu0 %v432
    %537 = vmatpush1.msra.mxu0 %v431
    %538 = vmatprep.subr.mxu0 0.0
    %539 = vmatpush1.msra.mxu0 0.0
    %540 = vmatprep.subr.mxu0 0.0
    %541 = vmatpush1.msra.mxu0 0.0
    %542 = vmatprep.subr.mxu0 0.0
    %543 = vmatpush1.msra.mxu0 0.0
    %544 = vmatprep.subr.mxu0 0.0
    %545 = vmatpush1.msra.mxu0 0.0
    %546 = vmatprep.subr.mxu0 0.0
    %547 = vmatpush1.msra.mxu0 0.0
    %548 = vmatprep.subr.mxu0 0.0
    %549 = vmatpush1.msra.mxu0 0.0
    %550 = vmatprep.subr.mxu0 0.0
    %551 = vmatpush1.msra.mxu0 0.0
    %552 = vmatprep.subr.mxu0 0.0
    %553 = vmatpush1.msra.mxu0 0.0
    %554 = vmatprep.subr.mxu0 0.0
    %555 = vmatpush1.msra.mxu0 0.0
    %556 = vmatprep.subr.mxu0 0.0
    %557 = vmatpush1.msra.mxu0 0.0
    %558 = vmatprep.subr.mxu0 0.0
    %559 = vmatpush1.msra.mxu0 0.0
    %560 = vmatprep.subr.mxu0 0.0
    %561 = vmatpush1.msra.mxu0 0.0
    %562 = vmatprep.subr.mxu0 0.0
    %563 = vmatpush1.msra.mxu0 0.0
    %564 = vmatprep.subr.mxu0 0.0
    %565 = vmatpush1.msra.mxu0 0.0
    %566 = vmatprep.subr.mxu0 0.0
    %567 = vmatpush1.msra.mxu0 0.0
    %568 = vmatprep.subr.mxu0 0.0
    %569 = vmatpush1.msra.mxu0 0.0
    %570 = vmatprep.mubr.f32.mxu0 0.0
    %571 = vmatmul.mubr.f32.gmra.mrb[0].mxu0 %v433
    %v572 = vpop.f32.mrb[0].mxu0
    %v573 = vadd.f32 0.0, %v572
    %v574 = vpop.f32.mrb[0].mxu0
    %v575 = vadd.f32 0.0, %v574
    %576 = vdwg.mxu0
    %v577 = vadd.f32 %v210, %v502
    %v578 = vadd.f32 %v212, %v504
    %v579 = vadd.f32 %v323, %v573
    %v580 = vadd.f32 %v325, %v575
    %v581 = vxor.u32 %v577, 2147483648
    %v582 = vmul.f32 %v581, 1.442695
    %v583 = vpow.pop %v582
    %v584 = vadd.f32 %v583, 1.0
    %v585 = vrcp.pop %v584
    %v586 = vmul.f32 1.0, %v585
    %v587 = vxor.u32 %v578, 2147483648
    %v588 = vmul.f32 %v587, 1.442695
    %v589 = vpow.pop %v588
    %v590 = vadd.f32 %v589, 1.0
    %v591 = vrcp.pop %v590
    %v592 = vmul.f32 1.0, %v591
    %v593 = vtanh.pop %v579
    %v594 = vxor.u32 %v580, 2147483648
    %v595 = vmul.f32 %v594, 1.442695
    %v596 = vpow.pop %v595
    %v597 = vadd.f32 %v596, 1.0
    %v598 = vrcp.pop %v597
    %v599 = vmul.f32 1.0, %v598
    %v600 = vmul.f32 %v592, %v434
    %v601 = vmul.f32 %v586, %v593
    %v602 = vadd.f32 %v600, %v601
    %v603 = vtanh.pop %v602
    %v604 = vmul.f32 %v599, %v603
    %605 = vst [vmem:[#allocation2] sm:$0xff] %v604
    %606 = vmatprep.subr.mxu0 %v370
    %607 = vmatpush1.msra.mxu0 %v369
    %608 = vmatprep.subr.mxu0 %v374
    %609 = vmatpush1.msra.mxu0 %v373
    %610 = vmatprep.subr.mxu0 %v378
    %611 = vmatpush1.msra.mxu0 %v377
    %612 = vmatprep.subr.mxu0 %v382
    %613 = vmatpush1.msra.mxu0 %v381
    %614 = vmatprep.subr.mxu0 %v386
    %615 = vmatpush1.msra.mxu0 %v385
    %616 = vmatprep.subr.mxu0 %v390
    %617 = vmatpush1.msra.mxu0 %v389
    %618 = vmatprep.subr.mxu0 %v394
    %619 = vmatpush1.msra.mxu0 %v393
    %620 = vmatprep.subr.mxu0 %v398
    %621 = vmatpush1.msra.mxu0 %v397
    %622 = vmatprep.subr.mxu0 %v402
    %623 = vmatpush1.msra.mxu0 %v401
    %624 = vmatprep.subr.mxu0 %v406
    %625 = vmatpush1.msra.mxu0 %v405
    %626 = vmatprep.subr.mxu0 %v410
    %627 = vmatpush1.msra.mxu0 %v409
    %628 = vmatprep.subr.mxu0 %v414
    %629 = vmatpush1.msra.mxu0 %v413
    %630 = vmatprep.subr.mxu0 %v418
    %631 = vmatpush1.msra.mxu0 %v417
    %632 = vmatprep.subr.mxu0 %v422
    %633 = vmatpush1.msra.mxu0 %v421
    %634 = vmatprep.subr.mxu0 %v426
    %635 = vmatpush1.msra.mxu0 %v425
    %636 = vmatprep.subr.mxu0 %v430
    %637 = vmatpush1.msra.mxu0 %v429
    %638 = vmatprep.subr.mxu0 0.0
    %639 = vmatpush1.msra.mxu0 0.0
    %640 = vmatprep.subr.mxu0 0.0
    %641 = vmatpush1.msra.mxu0 0.0
    %642 = vmatprep.subr.mxu0 0.0
    %643 = vmatpush1.msra.mxu0 0.0
    %644 = vmatprep.subr.mxu0 0.0
    %645 = vmatpush1.msra.mxu0 0.0
    %646 = vmatprep.subr.mxu0 0.0
    %647 = vmatpush1.msra.mxu0 0.0
    %648 = vmatprep.subr.mxu0 0.0
    %649 = vmatpush1.msra.mxu0 0.0
    %650 = vmatprep.subr.mxu0 0.0
    %651 = vmatpush1.msra.mxu0 0.0
    %652 = vmatprep.subr.mxu0 0.0
    %653 = vmatpush1.msra.mxu0 0.0
    %654 = vmatprep.subr.mxu0 0.0
    %655 = vmatpush1.msra.mxu0 0.0
    %656 = vmatprep.subr.mxu0 0.0
    %657 = vmatpush1.msra.mxu0 0.0
    %658 = vmatprep.subr.mxu0 0.0
    %659 = vmatpush1.msra.mxu0 0.0
    %660 = vmatprep.subr.mxu0 0.0
    %661 = vmatpush1.msra.mxu0 0.0
    %662 = vmatprep.subr.mxu0 0.0
    %663 = vmatpush1.msra.mxu0 0.0
    %664 = vmatprep.subr.mxu0 0.0
    %665 = vmatpush1.msra.mxu0 0.0
    %666 = vmatprep.subr.mxu0 0.0
    %667 = vmatpush1.msra.mxu0 0.0
    %668 = vmatprep.subr.mxu0 0.0
    %669 = vmatpush1.msra.mxu0 0.0
    %670 = vmatprep.mubr.f32.mxu0 0.0
    %671 = vmatmul.mubr.f32.gmra.mrb[0].mxu0 %v604
    %v672 = vpop.f32.mrb[0].mxu0
    %v673 = vadd.f32 0.0, %v672
    %v674 = vpop.f32.mrb[0].mxu0
    %v675 = vadd.f32 0.0, %v674
    %676 = vdwg.mxu0
    %677 = vmatprep.subr.mxu0 %v372
    %678 = vmatpush1.msra.mxu0 %v371
    %679 = vmatprep.subr.mxu0 %v376
    %680 = vmatpush1.msra.mxu0 %v375
    %681 = vmatprep.subr.mxu0 %v380
    %682 = vmatpush1.msra.mxu0 %v379
    %683 = vmatprep.subr.mxu0 %v384
    %684 = vmatpush1.msra.mxu0 %v383
    %685 = vmatprep.subr.mxu0 %v388
    %686 = vmatpush1.msra.mxu0 %v387
    %687 = vmatprep.subr.mxu0 %v392
    %688 = vmatpush1.msra.mxu0 %v391
    %689 = vmatprep.subr.mxu0 %v396
    %690 = vmatpush1.msra.mxu0 %v395
    %691 = vmatprep.subr.mxu0 %v400
    %692 = vmatpush1.msra.mxu0 %v399
    %693 = vmatprep.subr.mxu0 %v404
    %694 = vmatpush1.msra.mxu0 %v403
    %695 = vmatprep.subr.mxu0 %v408
    %696 = vmatpush1.msra.mxu0 %v407
    %697 = vmatprep.subr.mxu0 %v412
    %698 = vmatpush1.msra.mxu0 %v411
    %699 = vmatprep.subr.mxu0 %v416
    %700 = vmatpush1.msra.mxu0 %v415
    %701 = vmatprep.subr.mxu0 %v420
    %702 = vmatpush1.msra.mxu0 %v419
    %703 = vmatprep.subr.mxu0 %v424
    %704 = vmatpush1.msra.mxu0 %v423
    %705 = vmatprep.subr.mxu0 %v428
    %706 = vmatpush1.msra.mxu0 %v427
    %707 = vmatprep.subr.mxu0 %v432
    %708 = vmatpush1.msra.mxu0 %v431
    %709 = vmatprep.subr.mxu0 0.0
    %710 = vmatpush1.msra.mxu0 0.0
    %711 = vmatprep.subr.mxu0 0.0
    %712 = vmatpush1.msra.mxu0 0.0
    %713 = vmatprep.subr.mxu0 0.0
    %714 = vmatpush1.msra.mxu0 0.0
    %715 = vmatprep.subr.mxu0 0.0
    %716 = vmatpush1.msra.mxu0 0.0
    %717 = vmatprep.subr.mxu0 0.0
    %718 = vmatpush1.msra.mxu0 0.0
    %719 = vmatprep.subr.mxu0 0.0
    %720 = vmatpush1.msra.mxu0 0.0
    %721 = vmatprep.subr.mxu0 0.0
    %722 = vmatpush1.msra.mxu0 0.0
    %723 = vmatprep.subr.mxu0 0.0
    %724 = vmatpush1.msra.mxu0 0.0
    %725 = vmatprep.subr.mxu0 0.0
    %726 = vmatpush1.msra.mxu0 0.0
    %727 = vmatprep.subr.mxu0 0.0
    %728 = vmatpush1.msra.mxu0 0.0
    %729 = vmatprep.subr.mxu0 0.0
    %730 = vmatpush1.msra.mxu0 0.0
    %731 = vmatprep.subr.mxu0 0.0
    %732 = vmatpush1.msra.mxu0 0.0
    %733 = vmatprep.subr.mxu0 0.0
    %734 = vmatpush1.msra.mxu0 0.0
    %735 = vmatprep.subr.mxu0 0.0
    %736 = vmatpush1.msra.mxu0 0.0
    %737 = vmatprep.subr.mxu0 0.0
    %738 = vmatpush1.msra.mxu0 0.0
    %739 = vmatprep.subr.mxu0 0.0
    %740 = vmatpush1.msra.mxu0 0.0
    %741 = vmatprep.mubr.f32.mxu0 0.0
    %742 = vmatmul.mubr.f32.gmra.mrb[0].mxu0 %v604
    %v743 = vpop.f32.mrb[0].mxu0
    %v744 = vadd.f32 0.0, %v743
    %v745 = vpop.f32.mrb[0].mxu0
    %v746 = vadd.f32 0.0, %v745
    %747 = vdwg.mxu0
    %v748 = vadd.f32 %v216, %v673
    %v749 = vadd.f32 %v218, %v675
    %v750 = vadd.f32 %v329, %v744
    %v751 = vadd.f32 %v331, %v746
    %v752 = vxor.u32 %v748, 2147483648
    %v753 = vmul.f32 %v752, 1.442695
    %v754 = vpow.pop %v753
    %v755 = vadd.f32 %v754, 1.0
    %v756 = vrcp.pop %v755
    %v757 = vmul.f32 1.0, %v756
    %v758 = vxor.u32 %v749, 2147483648
    %v759 = vmul.f32 %v758, 1.442695
    %v760 = vpow.pop %v759
    %v761 = vadd.f32 %v760, 1.0
    %v762 = vrcp.pop %v761
    %v763 = vmul.f32 1.0, %v762
    %v764 = vtanh.pop %v750
    %v765 = vxor.u32 %v751, 2147483648
    %v766 = vmul.f32 %v765, 1.442695
    %v767 = vpow.pop %v766
    %v768 = vadd.f32 %v767, 1.0
    %v769 = vrcp.pop %v768
    %v770 = vmul.f32 1.0, %v769
    %v771 = vmul.f32 %v763, %v602
    %v772 = vmul.f32 %v757, %v764
    %v773 = vadd.f32 %v771, %v772
    %v774 = vtanh.pop %v773
    %v775 = vmul.f32 %v770, %v774
    %776 = vst [vmem:[#allocation2 + $0x8] sm:$0xff] %v775
    %777 = vmatprep.subr.mxu0 %v370
    %778 = vmatpush1.msra.mxu0 %v369
    %779 = vmatprep.subr.mxu0 %v374
    %780 = vmatpush1.msra.mxu0 %v373
    %781 = vmatprep.subr.mxu0 %v378
    %782 = vmatpush1.msra.mxu0 %v377
    %783 = vmatprep.subr.mxu0 %v382
    %784 = vmatpush1.msra.mxu0 %v381
    %785 = vmatprep.subr.mxu0 %v386
    %786 = vmatpush1.msra.mxu0 %v385
    %787 = vmatprep.subr.mxu0 %v390
    %788 = vmatpush1.msra.mxu0 %v389
    %789 = vmatprep.subr.mxu0 %v394
    %790 = vmatpush1.msra.mxu0 %v393
    %791 = vmatprep.subr.mxu0 %v398
    %792 = vmatpush1.msra.mxu0 %v397
    %793 = vmatprep.subr.mxu0 %v402
    %794 = vmatpush1.msra.mxu0 %v401
    %795 = vmatprep.subr.mxu0 %v406
    %796 = vmatpush1.msra.mxu0 %v405
    %797 = vmatprep.subr.mxu0 %v410
    %798 = vmatpush1.msra.mxu0 %v409
    %799 = vmatprep.subr.mxu0 %v414
    %800 = vmatpush1.msra.mxu0 %v413
    %801 = vmatprep.subr.mxu0 %v418
    %802 = vmatpush1.msra.mxu0 %v417
    %803 = vmatprep.subr.mxu0 %v422
    %804 = vmatpush1.msra.mxu0 %v421
    %805 = vmatprep.subr.mxu0 %v426
    %806 = vmatpush1.msra.mxu0 %v425
    %807 = vmatprep.subr.mxu0 %v430
    %808 = vmatpush1.msra.mxu0 %v429
    %809 = vmatprep.subr.mxu0 0.0
    %810 = vmatpush1.msra.mxu0 0.0
    %811 = vmatprep.subr.mxu0 0.0
    %812 = vmatpush1.msra.mxu0 0.0
    %813 = vmatprep.subr.mxu0 0.0
    %814 = vmatpush1.msra.mxu0 0.0
    %815 = vmatprep.subr.mxu0 0.0
    %816 = vmatpush1.msra.mxu0 0.0
    %817 = vmatprep.subr.mxu0 0.0
    %818 = vmatpush1.msra.mxu0 0.0
    %819 = vmatprep.subr.mxu0 0.0
    %820 = vmatpush1.msra.mxu0 0.0
    %821 = vmatprep.subr.mxu0 0.0
    %822 = vmatpush1.msra.mxu0 0.0
    %823 = vmatprep.subr.mxu0 0.0
    %824 = vmatpush1.msra.mxu0 0.0
    %825 = vmatprep.subr.mxu0 0.0
    %826 = vmatpush1.msra.mxu0 0.0
    %827 = vmatprep.subr.mxu0 0.0
    %828 = vmatpush1.msra.mxu0 0.0
    %829 = vmatprep.subr.mxu0 0.0
    %830 = vmatpush1.msra.mxu0 0.0
    %831 = vmatprep.subr.mxu0 0.0
    %832 = vmatpush1.msra.mxu0 0.0
    %833 = vmatprep.subr.mxu0 0.0
    %834 = vmatpush1.msra.mxu0 0.0
    %835 = vmatprep.subr.mxu0 0.0
    %836 = vmatpush1.msra.mxu0 0.0
    %837 = vmatprep.subr.mxu0 0.0
    %838 = vmatpush1.msra.mxu0 0.0
    %839 = vmatprep.subr.mxu0 0.0
    %840 = vmatpush1.msra.mxu0 0.0
    %841 = vmatprep.mubr.f32.mxu0 0.0
    %842 = vmatmul.mubr.f32.gmra.mrb[0].mxu0 %v775
    %v843 = vpop.f32.mrb[0].mxu0
    %v844 = vadd.f32 0.0, %v843
    %v845 = vpop.f32.mrb[0].mxu0
    %v846 = vadd.f32 0.0, %v845
    %847 = vdwg.mxu0
    %848 = vmatprep.subr.mxu0 %v372
    %849 = vmatpush1.msra.mxu0 %v371
    %850 = vmatprep.subr.mxu0 %v376
    %851 = vmatpush1.msra.mxu0 %v375
    %852 = vmatprep.subr.mxu0 %v380
    %853 = vmatpush1.msra.mxu0 %v379
    %854 = vmatprep.subr.mxu0 %v384
    %855 = vmatpush1.msra.mxu0 %v383
    %856 = vmatprep.subr.mxu0 %v388
    %857 = vmatpush1.msra.mxu0 %v387
    %858 = vmatprep.subr.mxu0 %v392
    %859 = vmatpush1.msra.mxu0 %v391
    %860 = vmatprep.subr.mxu0 %v396
    %861 = vmatpush1.msra.mxu0 %v395
    %862 = vmatprep.subr.mxu0 %v400
    %863 = vmatpush1.msra.mxu0 %v399
    %864 = vmatprep.subr.mxu0 %v404
    %865 = vmatpush1.msra.mxu0 %v403
    %866 = vmatprep.subr.mxu0 %v408
    %867 = vmatpush1.msra.mxu0 %v407
    %868 = vmatprep.subr.mxu0 %v412
    %869 = vmatpush1.msra.mxu0 %v411
    %870 = vmatprep.subr.mxu0 %v416
    %871 = vmatpush1.msra.mxu0 %v415
    %872 = vmatprep.subr.mxu0 %v420
    %873 = vmatpush1.msra.mxu0 %v419
    %874 = vmatprep.subr.mxu0 %v424
    %875 = vmatpush1.msra.mxu0 %v423
    %876 = vmatprep.subr.mxu0 %v428
    %877 = vmatpush1.msra.mxu0 %v427
    %878 = vmatprep.subr.mxu0 %v432
    %879 = vmatpush1.msra.mxu0 %v431
    %880 = vmatprep.subr.mxu0 0.0
    %881 = vmatpush1.msra.mxu0 0.0
    %882 = vmatprep.subr.mxu0 0.0
    %883 = vmatpush1.msra.mxu0 0.0
    %884 = vmatprep.subr.mxu0 0.0
    %885 = vmatpush1.msra.mxu0 0.0
    %886 = vmatprep.subr.mxu0 0.0
    %887 = vmatpush1.msra.mxu0 0.0
    %888 = vmatprep.subr.mxu0 0.0
    %889 = vmatpush1.msra.mxu0 0.0
    %890 = vmatprep.subr.mxu0 0.0
    %891 = vmatpush1.msra.mxu0 0.0
    %892 = vmatprep.subr.mxu0 0.0
    %893 = vmatpush1.msra.mxu0 0.0
    %894 = vmatprep.subr.mxu0 0.0
    %895 = vmatpush1.msra.mxu0 0.0
    %896 = vmatprep.subr.mxu0 0.0
    %897 = vmatpush1.msra.mxu0 0.0
    %898 = vmatprep.subr.mxu0 0.0
    %899 = vmatpush1.msra.mxu0 0.0
    %900 = vmatprep.subr.mxu0 0.0
    %901 = vmatpush1.msra.mxu0 0.0
    %902 = vmatprep.subr.mxu0 0.0
    %903 = vmatpush1.msra.mxu0 0.0
    %904 = vmatprep.subr.mxu0 0.0
    %905 = vmatpush1.msra.mxu0 0.0
    %906 = vmatprep.subr.mxu0 0.0
    %907 = vmatpush1.msra.mxu0 0.0
    %908 = vmatprep.subr.mxu0 0.0
    %909 = vmatpush1.msra.mxu0 0.0
    %910 = vmatprep.subr.mxu0 0.0
    %911 = vmatpush1.msra.mxu0 0.0
    %912 = vmatprep.mubr.f32.mxu0 0.0
    %913 = vmatmul.mubr.f32.gmra.mrb[0].mxu0 %v775
    %v914 = vpop.f32.mrb[0].mxu0
    %v915 = vadd.f32 0.0, %v914
    %v916 = vpop.f32.mrb[0].mxu0
    %v917 = vadd.f32 0.0, %v916
    %918 = vdwg.mxu0
    %v919 = vadd.f32 %v222, %v844
    %v920 = vadd.f32 %v224, %v846
    %v921 = vadd.f32 %v335, %v915
    %v922 = vadd.f32 %v337, %v917
    %v923 = vxor.u32 %v919, 2147483648
    %v924 = vmul.f32 %v923, 1.442695
    %v925 = vpow.pop %v924
    %v926 = vadd.f32 %v925, 1.0
    %v927 = vrcp.pop %v926
    %v928 = vmul.f32 1.0, %v927
    %v929 = vxor.u32 %v920, 2147483648
    %v930 = vmul.f32 %v929, 1.442695
    %v931 = vpow.pop %v930
    %v932 = vadd.f32 %v931, 1.0
    %v933 = vrcp.pop %v932
    %v934 = vmul.f32 1.0, %v933
    %v935 = vtanh.pop %v921
    %v936 = vxor.u32 %v922, 2147483648
    %v937 = vmul.f32 %v936, 1.442695
    %v938 = vpow.pop %v937
    %v939 = vadd.f32 %v938, 1.0
    %v940 = vrcp.pop %v939
    %v941 = vmul.f32 1.0, %v940
    %v942 = vmul.f32 %v934, %v773
    %v943 = vmul.f32 %v928, %v935
    %v944 = vadd.f32 %v942, %v943
    %v945 = vtanh.pop %v944
    %v946 = vmul.f32 %v941, %v945
    %947 = vst [vmem:[#allocation2 + $0x10] sm:$0xff] %v946
    %948 = vmatprep.subr.mxu0 %v370
    %949 = vmatpush1.msra.mxu0 %v369
    %950 = vmatprep.subr.mxu0 %v374
    %951 = vmatpush1.msra.mxu0 %v373
    %952 = vmatprep.subr.mxu0 %v378
    %953 = vmatpush1.msra.mxu0 %v377
    %954 = vmatprep.subr.mxu0 %v382
    %955 = vmatpush1.msra.mxu0 %v381
    %956 = vmatprep.subr.mxu0 %v386
    %957 = vmatpush1.msra.mxu0 %v385
    %958 = vmatprep.subr.mxu0 %v390
    %959 = vmatpush1.msra.mxu0 %v389
    %960 = vmatprep.subr.mxu0 %v394
    %961 = vmatpush1.msra.mxu0 %v393
    %962 = vmatprep.subr.mxu0 %v398
    %963 = vmatpush1.msra.mxu0 %v397
    %964 = vmatprep.subr.mxu0 %v402
    %965 = vmatpush1.msra.mxu0 %v401
    %966 = vmatprep.subr.mxu0 %v406
    %967 = vmatpush1.msra.mxu0 %v405
    %968 = vmatprep.subr.mxu0 %v410
    %969 = vmatpush1.msra.mxu0 %v409
    %970 = vmatprep.subr.mxu0 %v414
    %971 = vmatpush1.msra.mxu0 %v413
    %972 = vmatprep.subr.mxu0 %v418
    %973 = vmatpush1.msra.mxu0 %v417
    %974 = vmatprep.subr.mxu0 %v422
    %975 = vmatpush1.msra.mxu0 %v421
    %976 = vmatprep.subr.mxu0 %v426
    %977 = vmatpush1.msra.mxu0 %v425
    %978 = vmatprep.subr.mxu0 %v430
    %979 = vmatpush1.msra.mxu0 %v429
    %980 = vmatprep.subr.mxu0 0.0
    %981 = vmatpush1.msra.mxu0 0.0
    %982 = vmatprep.subr.mxu0 0.0
    %983 = vmatpush1.msra.mxu0 0.0
    %984 = vmatprep.subr.mxu0 0.0
    %985 = vmatpush1.msra.mxu0 0.0
    %986 = vmatprep.subr.mxu0 0.0
    %987 = vmatpush1.msra.mxu0 0.0
    %988 = vmatprep.subr.mxu0 0.0
    %989 = vmatpush1.msra.mxu0 0.0
    %990 = vmatprep.subr.mxu0 0.0
    %991 = vmatpush1.msra.mxu0 0.0
    %992 = vmatprep.subr.mxu0 0.0
    %993 = vmatpush1.msra.mxu0 0.0
    %994 = vmatprep.subr.mxu0 0.0
    %995 = vmatpush1.msra.mxu0 0.0
    %996 = vmatprep.subr.mxu0 0.0
    %997 = vmatpush1.msra.mxu0 0.0
    %998 = vmatprep.subr.mxu0 0.0
    %999 = vmatpush1.msra.mxu0 0.0
    %1000 = vmatprep.subr.mxu0 0.0
    %1001 = vmatpush1.msra.mxu0 0.0
    %1002 = vmatprep.subr.mxu0 0.0
    %1003 = vmatpush1.msra.mxu0 0.0
    %1004 = vmatprep.subr.mxu0 0.0
    %1005 = vmatpush1.msra.mxu0 0.0
    %1006 = vmatprep.subr.mxu0 0.0
    %1007 = vmatpush1.msra.mxu0 0.0
    %1008 = vmatprep.subr.mxu0 0.0
    %1009 = vmatpush1.msra.mxu0 0.0
    %1010 = vmatprep.subr.mxu0 0.0
    %1011 = vmatpush1.msra.mxu0 0.0
    %1012 = vmatprep.mubr.f32.mxu0 0.0
    %1013 = vmatmul.mubr.f32.gmra.mrb[0].mxu0 %v946
    %v1014 = vpop.f32.mrb[0].mxu0
    %v1015 = vadd.f32 0.0, %v1014
    %v1016 = vpop.f32.mrb[0].mxu0
    %v1017 = vadd.f32 0.0, %v1016
    %1018 = vdwg.mxu0
    %1019 = vmatprep.subr.mxu0 %v372
    %1020 = vmatpush1.msra.mxu0 %v371
    %1021 = vmatprep.subr.mxu0 %v376
    %1022 = vmatpush1.msra.mxu0 %v375
    %1023 = vmatprep.subr.mxu0 %v380
    %1024 = vmatpush1.msra.mxu0 %v379
    %1025 = vmatprep.subr.mxu0 %v384
    %1026 = vmatpush1.msra.mxu0 %v383
    %1027 = vmatprep.subr.mxu0 %v388
    %1028 = vmatpush1.msra.mxu0 %v387
    %1029 = vmatprep.subr.mxu0 %v392
    %1030 = vmatpush1.msra.mxu0 %v391
    %1031 = vmatprep.subr.mxu0 %v396
    %1032 = vmatpush1.msra.mxu0 %v395
    %1033 = vmatprep.subr.mxu0 %v400
    %1034 = vmatpush1.msra.mxu0 %v399
    %1035 = vmatprep.subr.mxu0 %v404
    %1036 = vmatpush1.msra.mxu0 %v403
    %1037 = vmatprep.subr.mxu0 %v408
    %1038 = vmatpush1.msra.mxu0 %v407
    %1039 = vmatprep.subr.mxu0 %v412
    %1040 = vmatpush1.msra.mxu0 %v411
    %1041 = vmatprep.subr.mxu0 %v416
    %1042 = vmatpush1.msra.mxu0 %v415
    %1043 = vmatprep.subr.mxu0 %v420
    %1044 = vmatpush1.msra.mxu0 %v419
    %1045 = vmatprep.subr.mxu0 %v424
    %1046 = vmatpush1.msra.mxu0 %v423
    %1047 = vmatprep.subr.mxu0 %v428
    %1048 = vmatpush1.msra.mxu0 %v427
    %1049 = vmatprep.subr.mxu0 %v432
    %1050 = vmatpush1.msra.mxu0 %v431
    %1051 = vmatprep.subr.mxu0 0.0
    %1052 = vmatpush1.msra.mxu0 0.0
    %1053 = vmatprep.subr.mxu0 0.0
    %1054 = vmatpush1.msra.mxu0 0.0
    %1055 = vmatprep.subr.mxu0 0.0
    %1056 = vmatpush1.msra.mxu0 0.0
    %1057 = vmatprep.subr.mxu0 0.0
    %1058 = vmatpush1.msra.mxu0 0.0
    %1059 = vmatprep.subr.mxu0 0.0
    %1060 = vmatpush1.msra.mxu0 0.0
    %1061 = vmatprep.subr.mxu0 0.0
    %1062 = vmatpush1.msra.mxu0 0.0
    %1063 = vmatprep.subr.mxu0 0.0
    %1064 = vmatpush1.msra.mxu0 0.0
    %1065 = vmatprep.subr.mxu0 0.0
    %1066 = vmatpush1.msra.mxu0 0.0
    %1067 = vmatprep.subr.mxu0 0.0
    %1068 = vmatpush1.msra.mxu0 0.0
    %1069 = vmatprep.subr.mxu0 0.0
    %1070 = vmatpush1.msra.mxu0 0.0
    %1071 = vmatprep.subr.mxu0 0.0
    %1072 = vmatpush1.msra.mxu0 0.0
    %1073 = vmatprep.subr.mxu0 0.0
    %1074 = vmatpush1.msra.mxu0 0.0
    %1075 = vmatprep.subr.mxu0 0.0
    %1076 = vmatpush1.msra.mxu0 0.0
    %1077 = vmatprep.subr.mxu0 0.0
    %1078 = vmatpush1.msra.mxu0 0.0
    %1079 = vmatprep.subr.mxu0 0.0
    %1080 = vmatpush1.msra.mxu0 0.0
    %1081 = vmatprep.subr.mxu0 0.0
    %1082 = vmatpush1.msra.mxu0 0.0
    %1083 = vmatprep.mubr.f32.mxu0 0.0
    %1084 = vmatmul.mubr.f32.gmra.mrb[0].mxu0 %v946
    %v1085 = vpop.f32.mrb[0].mxu0
    %v1086 = vadd.f32 0.0, %v1085
    %v1087 = vpop.f32.mrb[0].mxu0
    %v1088 = vadd.f32 0.0, %v1087
    %1089 = vdwg.mxu0
    %v1090 = vadd.f32 %v228, %v1015
    %v1091 = vadd.f32 %v230, %v1017
    %v1092 = vadd.f32 %v341, %v1086
    %v1093 = vadd.f32 %v343, %v1088
    %v1094 = vxor.u32 %v1090, 2147483648
    %v1095 = vmul.f32 %v1094, 1.442695
    %v1096 = vpow.pop %v1095
    %v1097 = vadd.f32 %v1096, 1.0
    %v1098 = vrcp.pop %v1097
    %v1099 = vmul.f32 1.0, %v1098
    %v1100 = vxor.u32 %v1091, 2147483648
    %v1101 = vmul.f32 %v1100, 1.442695
    %v1102 = vpow.pop %v1101
    %v1103 = vadd.f32 %v1102, 1.0
    %v1104 = vrcp.pop %v1103
    %v1105 = vmul.f32 1.0, %v1104
    %v1106 = vtanh.pop %v1092
    %v1107 = vxor.u32 %v1093, 2147483648
    %v1108 = vmul.f32 %v1107, 1.442695
    %v1109 = vpow.pop %v1108
    %v1110 = vadd.f32 %v1109, 1.0
    %v1111 = vrcp.pop %v1110
    %v1112 = vmul.f32 1.0, %v1111
    %v1113 = vmul.f32 %v1105, %v944
    %v1114 = vmul.f32 %v1099, %v1106
    %v1115 = vadd.f32 %v1113, %v1114
    %v1116 = vtanh.pop %v1115
    %v1117 = vmul.f32 %v1112, %v1116
    %1118 = vst [vmem:[#allocation2 + $0x18] sm:$0xff] %v1117
    %1119 = vmatprep.subr.mxu0 %v370
    %1120 = vmatpush1.msra.mxu0 %v369
    %1121 = vmatprep.subr.mxu0 %v374
    %1122 = vmatpush1.msra.mxu0 %v373
    %1123 = vmatprep.subr.mxu0 %v378
    %1124 = vmatpush1.msra.mxu0 %v377
    %1125 = vmatprep.subr.mxu0 %v382
    %1126 = vmatpush1.msra.mxu0 %v381
    %1127 = vmatprep.subr.mxu0 %v386
    %1128 = vmatpush1.msra.mxu0 %v385
    %1129 = vmatprep.subr.mxu0 %v390
    %1130 = vmatpush1.msra.mxu0 %v389
    %1131 = vmatprep.subr.mxu0 %v394
    %1132 = vmatpush1.msra.mxu0 %v393
    %1133 = vmatprep.subr.mxu0 %v398
    %1134 = vmatpush1.msra.mxu0 %v397
    %1135 = vmatprep.subr.mxu0 %v402
    %1136 = vmatpush1.msra.mxu0 %v401
    %1137 = vmatprep.subr.mxu0 %v406
    %1138 = vmatpush1.msra.mxu0 %v405
    %1139 = vmatprep.subr.mxu0 %v410
    %1140 = vmatpush1.msra.mxu0 %v409
    %1141 = vmatprep.subr.mxu0 %v414
    %1142 = vmatpush1.msra.mxu0 %v413
    %1143 = vmatprep.subr.mxu0 %v418
    %1144 = vmatpush1.msra.mxu0 %v417
    %1145 = vmatprep.subr.mxu0 %v422
    %1146 = vmatpush1.msra.mxu0 %v421
    %1147 = vmatprep.subr.mxu0 %v426
    %1148 = vmatpush1.msra.mxu0 %v425
    %1149 = vmatprep.subr.mxu0 %v430
    %1150 = vmatpush1.msra.mxu0 %v429
    %1151 = vmatprep.subr.mxu0 0.0
    %1152 = vmatpush1.msra.mxu0 0.0
    %1153 = vmatprep.subr.mxu0 0.0
    %1154 = vmatpush1.msra.mxu0 0.0
    %1155 = vmatprep.subr.mxu0 0.0
    %1156 = vmatpush1.msra.mxu0 0.0
    %1157 = vmatprep.subr.mxu0 0.0
    %1158 = vmatpush1.msra.mxu0 0.0
    %1159 = vmatprep.subr.mxu0 0.0
    %1160 = vmatpush1.msra.mxu0 0.0
    %1161 = vmatprep.subr.mxu0 0.0
    %1162 = vmatpush1.msra.mxu0 0.0
    %1163 = vmatprep.subr.mxu0 0.0
    %1164 = vmatpush1.msra.mxu0 0.0
    %1165 = vmatprep.subr.mxu0 0.0
    %1166 = vmatpush1.msra.mxu0 0.0
    %1167 = vmatprep.subr.mxu0 0.0
    %1168 = vmatpush1.msra.mxu0 0.0
    %1169 = vmatprep.subr.mxu0 0.0
    %1170 = vmatpush1.msra.mxu0 0.0
    %1171 = vmatprep.subr.mxu0 0.0
    %1172 = vmatpush1.msra.mxu0 0.0
    %1173 = vmatprep.subr.mxu0 0.0
    %1174 = vmatpush1.msra.mxu0 0.0
    %1175 = vmatprep.subr.mxu0 0.0
    %1176 = vmatpush1.msra.mxu0 0.0
    %1177 = vmatprep.subr.mxu0 0.0
    %1178 = vmatpush1.msra.mxu0 0.0
    %1179 = vmatprep.subr.mxu0 0.0
    %1180 = vmatpush1.msra.mxu0 0.0
    %1181 = vmatprep.subr.mxu0 0.0
    %1182 = vmatpush1.msra.mxu0 0.0
    %1183 = vmatprep.mubr.f32.mxu0 0.0
    %1184 = vmatmul.mubr.f32.gmra.mrb[0].mxu0 %v1117
    %v1185 = vpop.f32.mrb[0].mxu0
    %v1186 = vadd.f32 0.0, %v1185
    %v1187 = vpop.f32.mrb[0].mxu0
    %v1188 = vadd.f32 0.0, %v1187
    %1189 = vdwg.mxu0
    %1190 = vmatprep.subr.mxu0 %v372
    %1191 = vmatpush1.msra.mxu0 %v371
    %1192 = vmatprep.subr.mxu0 %v376
    %1193 = vmatpush1.msra.mxu0 %v375
    %1194 = vmatprep.subr.mxu0 %v380
    %1195 = vmatpush1.msra.mxu0 %v379
    %1196 = vmatprep.subr.mxu0 %v384
    %1197 = vmatpush1.msra.mxu0 %v383
    %1198 = vmatprep.subr.mxu0 %v388
    %1199 = vmatpush1.msra.mxu0 %v387
    %1200 = vmatprep.subr.mxu0 %v392
    %1201 = vmatpush1.msra.mxu0 %v391
    %1202 = vmatprep.subr.mxu0 %v396
    %1203 = vmatpush1.msra.mxu0 %v395
    %1204 = vmatprep.subr.mxu0 %v400
    %1205 = vmatpush1.msra.mxu0 %v399
    %1206 = vmatprep.subr.mxu0 %v404
    %1207 = vmatpush1.msra.mxu0 %v403
    %1208 = vmatprep.subr.mxu0 %v408
    %1209 = vmatpush1.msra.mxu0 %v407
    %1210 = vmatprep.subr.mxu0 %v412
    %1211 = vmatpush1.msra.mxu0 %v411
    %1212 = vmatprep.subr.mxu0 %v416
    %1213 = vmatpush1.msra.mxu0 %v415
    %1214 = vmatprep.subr.mxu0 %v420
    %1215 = vmatpush1.msra.mxu0 %v419
    %1216 = vmatprep.subr.mxu0 %v424
    %1217 = vmatpush1.msra.mxu0 %v423
    %1218 = vmatprep.subr.mxu0 %v428
    %1219 = vmatpush1.msra.mxu0 %v427
    %1220 = vmatprep.subr.mxu0 %v432
    %1221 = vmatpush1.msra.mxu0 %v431
    %1222 = vmatprep.subr.mxu0 0.0
    %1223 = vmatpush1.msra.mxu0 0.0
    %1224 = vmatprep.subr.mxu0 0.0
    %1225 = vmatpush1.msra.mxu0 0.0
    %1226 = vmatprep.subr.mxu0 0.0
    %1227 = vmatpush1.msra.mxu0 0.0
    %1228 = vmatprep.subr.mxu0 0.0
    %1229 = vmatpush1.msra.mxu0 0.0
    %1230 = vmatprep.subr.mxu0 0.0
    %1231 = vmatpush1.msra.mxu0 0.0
    %1232 = vmatprep.subr.mxu0 0.0
    %1233 = vmatpush1.msra.mxu0 0.0
    %1234 = vmatprep.subr.mxu0 0.0
    %1235 = vmatpush1.msra.mxu0 0.0
    %1236 = vmatprep.subr.mxu0 0.0
    %1237 = vmatpush1.msra.mxu0 0.0
    %1238 = vmatprep.subr.mxu0 0.0
    %1239 = vmatpush1.msra.mxu0 0.0
    %1240 = vmatprep.subr.mxu0 0.0
    %1241 = vmatpush1.msra.mxu0 0.0
    %1242 = vmatprep.subr.mxu0 0.0
    %1243 = vmatpush1.msra.mxu0 0.0
    %1244 = vmatprep.subr.mxu0 0.0
    %1245 = vmatpush1.msra.mxu0 0.0
    %1246 = vmatprep.subr.mxu0 0.0
    %1247 = vmatpush1.msra.mxu0 0.0
    %1248 = vmatprep.subr.mxu0 0.0
    %1249 = vmatpush1.msra.mxu0 0.0
    %1250 = vmatprep.subr.mxu0 0.0
    %1251 = vmatpush1.msra.mxu0 0.0
    %1252 = vmatprep.subr.mxu0 0.0
    %1253 = vmatpush1.msra.mxu0 0.0
    %1254 = vmatprep.mubr.f32.mxu0 0.0
    %1255 = vmatmul.mubr.f32.gmra.mrb[0].mxu0 %v1117
    %v1256 = vpop.f32.mrb[0].mxu0
    %v1257 = vadd.f32 0.0, %v1256
    %v1258 = vpop.f32.mrb[0].mxu0
    %v1259 = vadd.f32 0.0, %v1258
    %1260 = vdwg.mxu0
    %v1261 = vadd.f32 %v234, %v1186
    %v1262 = vadd.f32 %v236, %v1188
    %v1263 = vadd.f32 %v347, %v1257
    %v1264 = vadd.f32 %v349, %v1259
    %v1265 = vxor.u32 %v1261, 2147483648
    %v1266 = vmul.f32 %v1265, 1.442695
    %v1267 = vpow.pop %v1266
    %v1268 = vadd.f32 %v1267, 1.0
    %v1269 = vrcp.pop %v1268
    %v1270 = vmul.f32 1.0, %v1269
    %v1271 = vxor.u32 %v1262, 2147483648
    %v1272 = vmul.f32 %v1271, 1.442695
    %v1273 = vpow.pop %v1272
    %v1274 = vadd.f32 %v1273, 1.0
    %v1275 = vrcp.pop %v1274
    %v1276 = vmul.f32 1.0, %v1275
    %v1277 = vtanh.pop %v1263
    %v1278 = vxor.u32 %v1264, 2147483648
    %v1279 = vmul.f32 %v1278, 1.442695
    %v1280 = vpow.pop %v1279
    %v1281 = vadd.f32 %v1280, 1.0
    %v1282 = vrcp.pop %v1281
    %v1283 = vmul.f32 1.0, %v1282
    %v1284 = vmul.f32 %v1276, %v1115
    %v1285 = vmul.f32 %v1270, %v1277
    %v1286 = vadd.f32 %v1284, %v1285
    %v1287 = vtanh.pop %v1286
    %v1288 = vmul.f32 %v1283, %v1287
    %1289 = vst [vmem:[#allocation2 + $0x20] sm:$0xff] %v1288
    %1290 = vmatprep.subr.mxu0 %v370
    %1291 = vmatpush1.msra.mxu0 %v369
    %1292 = vmatprep.subr.mxu0 %v374
    %1293 = vmatpush1.msra.mxu0 %v373
    %1294 = vmatprep.subr.mxu0 %v378
    %1295 = vmatpush1.msra.mxu0 %v377
    %1296 = vmatprep.subr.mxu0 %v382
    %1297 = vmatpush1.msra.mxu0 %v381
    %1298 = vmatprep.subr.mxu0 %v386
    %1299 = vmatpush1.msra.mxu0 %v385
    %1300 = vmatprep.subr.mxu0 %v390
    %1301 = vmatpush1.msra.mxu0 %v389
    %1302 = vmatprep.subr.mxu0 %v394
    %1303 = vmatpush1.msra.mxu0 %v393
    %1304 = vmatprep.subr.mxu0 %v398
    %1305 = vmatpush1.msra.mxu0 %v397
    %1306 = vmatprep.subr.mxu0 %v402
    %1307 = vmatpush1.msra.mxu0 %v401
    %1308 = vmatprep.subr.mxu0 %v406
    %1309 = vmatpush1.msra.mxu0 %v405
    %1310 = vmatprep.subr.mxu0 %v410
    %1311 = vmatpush1.msra.mxu0 %v409
    %1312 = vmatprep.subr.mxu0 %v414
    %1313 = vmatpush1.msra.mxu0 %v413
    %1314 = vmatprep.subr.mxu0 %v418
    %1315 = vmatpush1.msra.mxu0 %v417
    %1316 = vmatprep.subr.mxu0 %v422
    %1317 = vmatpush1.msra.mxu0 %v421
    %1318 = vmatprep.subr.mxu0 %v426
    %1319 = vmatpush1.msra.mxu0 %v425
    %1320 = vmatprep.subr.mxu0 %v430
    %1321 = vmatpush1.msra.mxu0 %v429
    %1322 = vmatprep.subr.mxu0 0.0
    %1323 = vmatpush1.msra.mxu0 0.0
    %1324 = vmatprep.subr.mxu0 0.0
    %1325 = vmatpush1.msra.mxu0 0.0
    %1326 = vmatprep.subr.mxu0 0.0
    %1327 = vmatpush1.msra.mxu0 0.0
    %1328 = vmatprep.subr.mxu0 0.0
    %1329 = vmatpush1.msra.mxu0 0.0
    %1330 = vmatprep.subr.mxu0 0.0
    %1331 = vmatpush1.msra.mxu0 0.0
    %1332 = vmatprep.subr.mxu0 0.0
    %1333 = vmatpush1.msra.mxu0 0.0
    %1334 = vmatprep.subr.mxu0 0.0
    %1335 = vmatpush1.msra.mxu0 0.0
    %1336 = vmatprep.subr.mxu0 0.0
    %1337 = vmatpush1.msra.mxu0 0.0
    %1338 = vmatprep.subr.mxu0 0.0
    %1339 = vmatpush1.msra.mxu0 0.0
    %1340 = vmatprep.subr.mxu0 0.0
    %1341 = vmatpush1.msra.mxu0 0.0
    %1342 = vmatprep.subr.mxu0 0.0
    %1343 = vmatpush1.msra.mxu0 0.0
    %1344 = vmatprep.subr.mxu0 0.0
    %1345 = vmatpush1.msra.mxu0 0.0
    %1346 = vmatprep.subr.mxu0 0.0
    %1347 = vmatpush1.msra.mxu0 0.0
    %1348 = vmatprep.subr.mxu0 0.0
    %1349 = vmatpush1.msra.mxu0 0.0
    %1350 = vmatprep.subr.mxu0 0.0
    %1351 = vmatpush1.msra.mxu0 0.0
    %1352 = vmatprep.subr.mxu0 0.0
    %1353 = vmatpush1.msra.mxu0 0.0
    %1354 = vmatprep.mubr.f32.mxu0 0.0
    %1355 = vmatmul.mubr.f32.gmra.mrb[0].mxu0 %v1288
    %v1356 = vpop.f32.mrb[0].mxu0
    %v1357 = vadd.f32 0.0, %v1356
    %v1358 = vpop.f32.mrb[0].mxu0
    %v1359 = vadd.f32 0.0, %v1358
    %1360 = vdwg.mxu0
    %1361 = vmatprep.subr.mxu0 %v372
    %1362 = vmatpush1.msra.mxu0 %v371
    %1363 = vmatprep.subr.mxu0 %v376
    %1364 = vmatpush1.msra.mxu0 %v375
    %1365 = vmatprep.subr.mxu0 %v380
    %1366 = vmatpush1.msra.mxu0 %v379
    %1367 = vmatprep.subr.mxu0 %v384
    %1368 = vmatpush1.msra.mxu0 %v383
    %1369 = vmatprep.subr.mxu0 %v388
    %1370 = vmatpush1.msra.mxu0 %v387
    %1371 = vmatprep.subr.mxu0 %v392
    %1372 = vmatpush1.msra.mxu0 %v391
    %1373 = vmatprep.subr.mxu0 %v396
    %1374 = vmatpush1.msra.mxu0 %v395
    %1375 = vmatprep.subr.mxu0 %v400
    %1376 = vmatpush1.msra.mxu0 %v399
    %1377 = vmatprep.subr.mxu0 %v404
    %1378 = vmatpush1.msra.mxu0 %v403
    %1379 = vmatprep.subr.mxu0 %v408
    %1380 = vmatpush1.msra.mxu0 %v407
    %1381 = vmatprep.subr.mxu0 %v412
    %1382 = vmatpush1.msra.mxu0 %v411
    %1383 = vmatprep.subr.mxu0 %v416
    %1384 = vmatpush1.msra.mxu0 %v415
    %1385 = vmatprep.subr.mxu0 %v420
    %1386 = vmatpush1.msra.mxu0 %v419
    %1387 = vmatprep.subr.mxu0 %v424
    %1388 = vmatpush1.msra.mxu0 %v423
    %1389 = vmatprep.subr.mxu0 %v428
    %1390 = vmatpush1.msra.mxu0 %v427
    %1391 = vmatprep.subr.mxu0 %v432
    %1392 = vmatpush1.msra.mxu0 %v431
    %1393 = vmatprep.subr.mxu0 0.0
    %1394 = vmatpush1.msra.mxu0 0.0
    %1395 = vmatprep.subr.mxu0 0.0
    %1396 = vmatpush1.msra.mxu0 0.0
    %1397 = vmatprep.subr.mxu0 0.0
    %1398 = vmatpush1.msra.mxu0 0.0
    %1399 = vmatprep.subr.mxu0 0.0
    %1400 = vmatpush1.msra.mxu0 0.0
    %1401 = vmatprep.subr.mxu0 0.0
    %1402 = vmatpush1.msra.mxu0 0.0
    %1403 = vmatprep.subr.mxu0 0.0
    %1404 = vmatpush1.msra.mxu0 0.0
    %1405 = vmatprep.subr.mxu0 0.0
    %1406 = vmatpush1.msra.mxu0 0.0
    %1407 = vmatprep.subr.mxu0 0.0
    %1408 = vmatpush1.msra.mxu0 0.0
    %1409 = vmatprep.subr.mxu0 0.0
    %1410 = vmatpush1.msra.mxu0 0.0
    %1411 = vmatprep.subr.mxu0 0.0
    %1412 = vmatpush1.msra.mxu0 0.0
    %1413 = vmatprep.subr.mxu0 0.0
    %1414 = vmatpush1.msra.mxu0 0.0
    %1415 = vmatprep.subr.mxu0 0.0
    %1416 = vmatpush1.msra.mxu0 0.0
    %1417 = vmatprep.subr.mxu0 0.0
    %1418 = vmatpush1.msra.mxu0 0.0
    %1419 = vmatprep.subr.mxu0 0.0
    %1420 = vmatpush1.msra.mxu0 0.0
    %1421 = vmatprep.subr.mxu0 0.0
    %1422 = vmatpush1.msra.mxu0 0.0
    %1423 = vmatprep.subr.mxu0 0.0
    %1424 = vmatpush1.msra.mxu0 0.0
    %1425 = vmatprep.mubr.f32.mxu0 0.0
    %1426 = vmatmul.mubr.f32.gmra.mrb[0].mxu0 %v1288
    %v1427 = vpop.f32.mrb[0].mxu0
    %v1428 = vadd.f32 0.0, %v1427
    %v1429 = vpop.f32.mrb[0].mxu0
    %v1430 = vadd.f32 0.0, %v1429
    %1431 = vdwg.mxu0
    %v1432 = vadd.f32 %v240, %v1357
    %v1433 = vadd.f32 %v242, %v1359
    %v1434 = vadd.f32 %v353, %v1428
    %v1435 = vadd.f32 %v355, %v1430
    %v1436 = vxor.u32 %v1432, 2147483648
    %v1437 = vmul.f32 %v1436, 1.442695
    %v1438 = vpow.pop %v1437
    %v1439 = vadd.f32 %v1438, 1.0
    %v1440 = vrcp.pop %v1439
    %v1441 = vmul.f32 1.0, %v1440
    %v1442 = vxor.u32 %v1433, 2147483648
    %v1443 = vmul.f32 %v1442, 1.442695
    %v1444 = vpow.pop %v1443
    %v1445 = vadd.f32 %v1444, 1.0
    %v1446 = vrcp.pop %v1445
    %v1447 = vmul.f32 1.0, %v1446
    %v1448 = vtanh.pop %v1434
    %v1449 = vxor.u32 %v1435, 2147483648
    %v1450 = vmul.f32 %v1449, 1.442695
    %v1451 = vpow.pop %v1450
    %v1452 = vadd.f32 %v1451, 1.0
    %v1453 = vrcp.pop %v1452
    %v1454 = vmul.f32 1.0, %v1453
    %v1455 = vmul.f32 %v1447, %v1286
    %v1456 = vmul.f32 %v1441, %v1448
    %v1457 = vadd.f32 %v1455, %v1456
    %v1458 = vtanh.pop %v1457
    %v1459 = vmul.f32 %v1454, %v1458
    %1460 = vst [vmem:[#allocation2 + $0x28] sm:$0xff] %v1459
    %1461 = vmatprep.subr.mxu0 %v370
    %1462 = vmatpush1.msra.mxu0 %v369
    %1463 = vmatprep.subr.mxu0 %v374
    %1464 = vmatpush1.msra.mxu0 %v373
    %1465 = vmatprep.subr.mxu0 %v378
    %1466 = vmatpush1.msra.mxu0 %v377
    %1467 = vmatprep.subr.mxu0 %v382
    %1468 = vmatpush1.msra.mxu0 %v381
    %1469 = vmatprep.subr.mxu0 %v386
    %1470 = vmatpush1.msra.mxu0 %v385
    %1471 = vmatprep.subr.mxu0 %v390
    %1472 = vmatpush1.msra.mxu0 %v389
    %1473 = vmatprep.subr.mxu0 %v394
    %1474 = vmatpush1.msra.mxu0 %v393
    %1475 = vmatprep.subr.mxu0 %v398
    %1476 = vmatpush1.msra.mxu0 %v397
    %1477 = vmatprep.subr.mxu0 %v402
    %1478 = vmatpush1.msra.mxu0 %v401
    %1479 = vmatprep.subr.mxu0 %v406
    %1480 = vmatpush1.msra.mxu0 %v405
    %1481 = vmatprep.subr.mxu0 %v410
    %1482 = vmatpush1.msra.mxu0 %v409
    %1483 = vmatprep.subr.mxu0 %v414
    %1484 = vmatpush1.msra.mxu0 %v413
    %1485 = vmatprep.subr.mxu0 %v418
    %1486 = vmatpush1.msra.mxu0 %v417
    %1487 = vmatprep.subr.mxu0 %v422
    %1488 = vmatpush1.msra.mxu0 %v421
    %1489 = vmatprep.subr.mxu0 %v426
    %1490 = vmatpush1.msra.mxu0 %v425
    %1491 = vmatprep.subr.mxu0 %v430
    %1492 = vmatpush1.msra.mxu0 %v429
    %1493 = vmatprep.subr.mxu0 0.0
    %1494 = vmatpush1.msra.mxu0 0.0
    %1495 = vmatprep.subr.mxu0 0.0
    %1496 = vmatpush1.msra.mxu0 0.0
    %1497 = vmatprep.subr.mxu0 0.0
    %1498 = vmatpush1.msra.mxu0 0.0
    %1499 = vmatprep.subr.mxu0 0.0
    %1500 = vmatpush1.msra.mxu0 0.0
    %1501 = vmatprep.subr.mxu0 0.0
    %1502 = vmatpush1.msra.mxu0 0.0
    %1503 = vmatprep.subr.mxu0 0.0
    %1504 = vmatpush1.msra.mxu0 0.0
    %1505 = vmatprep.subr.mxu0 0.0
    %1506 = vmatpush1.msra.mxu0 0.0
    %1507 = vmatprep.subr.mxu0 0.0
    %1508 = vmatpush1.msra.mxu0 0.0
    %1509 = vmatprep.subr.mxu0 0.0
    %1510 = vmatpush1.msra.mxu0 0.0
    %1511 = vmatprep.subr.mxu0 0.0
    %1512 = vmatpush1.msra.mxu0 0.0
    %1513 = vmatprep.subr.mxu0 0.0
    %1514 = vmatpush1.msra.mxu0 0.0
    %1515 = vmatprep.subr.mxu0 0.0
    %1516 = vmatpush1.msra.mxu0 0.0
    %1517 = vmatprep.subr.mxu0 0.0
    %1518 = vmatpush1.msra.mxu0 0.0
    %1519 = vmatprep.subr.mxu0 0.0
    %1520 = vmatpush1.msra.mxu0 0.0
    %1521 = vmatprep.subr.mxu0 0.0
    %1522 = vmatpush1.msra.mxu0 0.0
    %1523 = vmatprep.subr.mxu0 0.0
    %1524 = vmatpush1.msra.mxu0 0.0
    %1525 = vmatprep.mubr.f32.mxu0 0.0
    %1526 = vmatmul.mubr.f32.gmra.mrb[0].mxu0 %v1459
    %v1527 = vpop.f32.mrb[0].mxu0
    %v1528 = vadd.f32 0.0, %v1527
    %v1529 = vpop.f32.mrb[0].mxu0
    %v1530 = vadd.f32 0.0, %v1529
    %1531 = vdwg.mxu0
    %1532 = vmatprep.subr.mxu0 %v372
    %1533 = vmatpush1.msra.mxu0 %v371
    %1534 = vmatprep.subr.mxu0 %v376
    %1535 = vmatpush1.msra.mxu0 %v375
    %1536 = vmatprep.subr.mxu0 %v380
    %1537 = vmatpush1.msra.mxu0 %v379
    %1538 = vmatprep.subr.mxu0 %v384
    %1539 = vmatpush1.msra.mxu0 %v383
    %1540 = vmatprep.subr.mxu0 %v388
    %1541 = vmatpush1.msra.mxu0 %v387
    %1542 = vmatprep.subr.mxu0 %v392
    %1543 = vmatpush1.msra.mxu0 %v391
    %1544 = vmatprep.subr.mxu0 %v396
    %1545 = vmatpush1.msra.mxu0 %v395
    %1546 = vmatprep.subr.mxu0 %v400
    %1547 = vmatpush1.msra.mxu0 %v399
    %1548 = vmatprep.subr.mxu0 %v404
    %1549 = vmatpush1.msra.mxu0 %v403
    %1550 = vmatprep.subr.mxu0 %v408
    %1551 = vmatpush1.msra.mxu0 %v407
    %1552 = vmatprep.subr.mxu0 %v412
    %1553 = vmatpush1.msra.mxu0 %v411
    %1554 = vmatprep.subr.mxu0 %v416
    %1555 = vmatpush1.msra.mxu0 %v415
    %1556 = vmatprep.subr.mxu0 %v420
    %1557 = vmatpush1.msra.mxu0 %v419
    %1558 = vmatprep.subr.mxu0 %v424
    %1559 = vmatpush1.msra.mxu0 %v423
    %1560 = vmatprep.subr.mxu0 %v428
    %1561 = vmatpush1.msra.mxu0 %v427
    %1562 = vmatprep.subr.mxu0 %v432
    %1563 = vmatpush1.msra.mxu0 %v431
    %1564 = vmatprep.subr.mxu0 0.0
    %1565 = vmatpush1.msra.mxu0 0.0
    %1566 = vmatprep.subr.mxu0 0.0
    %1567 = vmatpush1.msra.mxu0 0.0
    %1568 = vmatprep.subr.mxu0 0.0
    %1569 = vmatpush1.msra.mxu0 0.0
    %1570 = vmatprep.subr.mxu0 0.0
    %1571 = vmatpush1.msra.mxu0 0.0
    %1572 = vmatprep.subr.mxu0 0.0
    %1573 = vmatpush1.msra.mxu0 0.0
    %1574 = vmatprep.subr.mxu0 0.0
    %1575 = vmatpush1.msra.mxu0 0.0
    %1576 = vmatprep.subr.mxu0 0.0
    %1577 = vmatpush1.msra.mxu0 0.0
    %1578 = vmatprep.subr.mxu0 0.0
    %1579 = vmatpush1.msra.mxu0 0.0
    %1580 = vmatprep.subr.mxu0 0.0
    %1581 = vmatpush1.msra.mxu0 0.0
    %1582 = vmatprep.subr.mxu0 0.0
    %1583 = vmatpush1.msra.mxu0 0.0
    %1584 = vmatprep.subr.mxu0 0.0
    %1585 = vmatpush1.msra.mxu0 0.0
    %1586 = vmatprep.subr.mxu0 0.0
    %1587 = vmatpush1.msra.mxu0 0.0
    %1588 = vmatprep.subr.mxu0 0.0
    %1589 = vmatpush1.msra.mxu0 0.0
    %1590 = vmatprep.subr.mxu0 0.0
    %1591 = vmatpush1.msra.mxu0 0.0
    %1592 = vmatprep.subr.mxu0 0.0
    %1593 = vmatpush1.msra.mxu0 0.0
    %1594 = vmatprep.subr.mxu0 0.0
    %1595 = vmatpush1.msra.mxu0 0.0
    %1596 = vmatprep.mubr.f32.mxu0 0.0
    %1597 = vmatmul.mubr.f32.gmra.mrb[0].mxu0 %v1459
    %v1598 = vpop.f32.mrb[0].mxu0
    %v1599 = vadd.f32 0.0, %v1598
    %v1600 = vpop.f32.mrb[0].mxu0
    %v1601 = vadd.f32 0.0, %v1600
    %1602 = vdwg.mxu0
    %v1603 = vadd.f32 %v246, %v1528
    %v1604 = vadd.f32 %v248, %v1530
    %v1605 = vadd.f32 %v359, %v1599
    %v1606 = vadd.f32 %v361, %v1601
    %v1607 = vxor.u32 %v1603, 2147483648
    %v1608 = vmul.f32 %v1607, 1.442695
    %v1609 = vpow.pop %v1608
    %v1610 = vadd.f32 %v1609, 1.0
    %v1611 = vrcp.pop %v1610
    %v1612 = vmul.f32 1.0, %v1611
    %v1613 = vxor.u32 %v1604, 2147483648
    %v1614 = vmul.f32 %v1613, 1.442695
    %v1615 = vpow.pop %v1614
    %v1616 = vadd.f32 %v1615, 1.0
    %v1617 = vrcp.pop %v1616
    %v1618 = vmul.f32 1.0, %v1617
    %v1619 = vtanh.pop %v1605
    %v1620 = vxor.u32 %v1606, 2147483648
    %v1621 = vmul.f32 %v1620, 1.442695
    %v1622 = vpow.pop %v1621
    %v1623 = vadd.f32 %v1622, 1.0
    %v1624 = vrcp.pop %v1623
    %v1625 = vmul.f32 1.0, %v1624
    %v1626 = vmul.f32 %v1618, %v1457
    %v1627 = vmul.f32 %v1612, %v1619
    %v1628 = vadd.f32 %v1626, %v1627
    %v1629 = vtanh.pop %v1628
    %v1630 = vmul.f32 %v1625, %v1629
    %1631 = vst [vmem:[#allocation2 + $0x30] sm:$0xff] %v1630
    %1632 = vmatprep.subr.mxu0 %v370
    %1633 = vmatpush1.msra.mxu0 %v369
    %1634 = vmatprep.subr.mxu0 %v374
    %1635 = vmatpush1.msra.mxu0 %v373
    %1636 = vmatprep.subr.mxu0 %v378
    %1637 = vmatpush1.msra.mxu0 %v377
    %1638 = vmatprep.subr.mxu0 %v382
    %1639 = vmatpush1.msra.mxu0 %v381
    %1640 = vmatprep.subr.mxu0 %v386
    %1641 = vmatpush1.msra.mxu0 %v385
    %1642 = vmatprep.subr.mxu0 %v390
    %1643 = vmatpush1.msra.mxu0 %v389
    %1644 = vmatprep.subr.mxu0 %v394
    %1645 = vmatpush1.msra.mxu0 %v393
    %1646 = vmatprep.subr.mxu0 %v398
    %1647 = vmatpush1.msra.mxu0 %v397
    %1648 = vmatprep.subr.mxu0 %v402
    %1649 = vmatpush1.msra.mxu0 %v401
    %1650 = vmatprep.subr.mxu0 %v406
    %1651 = vmatpush1.msra.mxu0 %v405
    %1652 = vmatprep.subr.mxu0 %v410
    %1653 = vmatpush1.msra.mxu0 %v409
    %1654 = vmatprep.subr.mxu0 %v414
    %1655 = vmatpush1.msra.mxu0 %v413
    %1656 = vmatprep.subr.mxu0 %v418
    %1657 = vmatpush1.msra.mxu0 %v417
    %1658 = vmatprep.subr.mxu0 %v422
    %1659 = vmatpush1.msra.mxu0 %v421
    %1660 = vmatprep.subr.mxu0 %v426
    %1661 = vmatpush1.msra.mxu0 %v425
    %1662 = vmatprep.subr.mxu0 %v430
    %1663 = vmatpush1.msra.mxu0 %v429
    %1664 = vmatprep.subr.mxu0 0.0
    %1665 = vmatpush1.msra.mxu0 0.0
    %1666 = vmatprep.subr.mxu0 0.0
    %1667 = vmatpush1.msra.mxu0 0.0
    %1668 = vmatprep.subr.mxu0 0.0
    %1669 = vmatpush1.msra.mxu0 0.0
    %1670 = vmatprep.subr.mxu0 0.0
    %1671 = vmatpush1.msra.mxu0 0.0
    %1672 = vmatprep.subr.mxu0 0.0
    %1673 = vmatpush1.msra.mxu0 0.0
    %1674 = vmatprep.subr.mxu0 0.0
    %1675 = vmatpush1.msra.mxu0 0.0
    %1676 = vmatprep.subr.mxu0 0.0
    %1677 = vmatpush1.msra.mxu0 0.0
    %1678 = vmatprep.subr.mxu0 0.0
    %1679 = vmatpush1.msra.mxu0 0.0
    %1680 = vmatprep.subr.mxu0 0.0
    %1681 = vmatpush1.msra.mxu0 0.0
    %1682 = vmatprep.subr.mxu0 0.0
    %1683 = vmatpush1.msra.mxu0 0.0
    %1684 = vmatprep.subr.mxu0 0.0
    %1685 = vmatpush1.msra.mxu0 0.0
    %1686 = vmatprep.subr.mxu0 0.0
    %1687 = vmatpush1.msra.mxu0 0.0
    %1688 = vmatprep.subr.mxu0 0.0
    %1689 = vmatpush1.msra.mxu0 0.0
    %1690 = vmatprep.subr.mxu0 0.0
    %1691 = vmatpush1.msra.mxu0 0.0
    %1692 = vmatprep.subr.mxu0 0.0
    %1693 = vmatpush1.msra.mxu0 0.0
    %1694 = vmatprep.subr.mxu0 0.0
    %1695 = vmatpush1.msra.mxu0 0.0
    %1696 = vmatprep.mubr.f32.mxu0 0.0
    %1697 = vmatmul.mubr.f32.gmra.mrb[0].mxu0 %v1630
    %v1698 = vpop.f32.mrb[0].mxu0
    %v1699 = vadd.f32 0.0, %v1698
    %v1700 = vpop.f32.mrb[0].mxu0
    %v1701 = vadd.f32 0.0, %v1700
    %1702 = vdwg.mxu0
    %1703 = vmatprep.subr.mxu0 %v372
    %1704 = vmatpush1.msra.mxu0 %v371
    %1705 = vmatprep.subr.mxu0 %v376
    %1706 = vmatpush1.msra.mxu0 %v375
    %1707 = vmatprep.subr.mxu0 %v380
    %1708 = vmatpush1.msra.mxu0 %v379
    %1709 = vmatprep.subr.mxu0 %v384
    %1710 = vmatpush1.msra.mxu0 %v383
    %1711 = vmatprep.subr.mxu0 %v388
    %1712 = vmatpush1.msra.mxu0 %v387
    %1713 = vmatprep.subr.mxu0 %v392
    %1714 = vmatpush1.msra.mxu0 %v391
    %1715 = vmatprep.subr.mxu0 %v396
    %1716 = vmatpush1.msra.mxu0 %v395
    %1717 = vmatprep.subr.mxu0 %v400
    %1718 = vmatpush1.msra.mxu0 %v399
    %1719 = vmatprep.subr.mxu0 %v404
    %1720 = vmatpush1.msra.mxu0 %v403
    %1721 = vmatprep.subr.mxu0 %v408
    %1722 = vmatpush1.msra.mxu0 %v407
    %1723 = vmatprep.subr.mxu0 %v412
    %1724 = vmatpush1.msra.mxu0 %v411
    %1725 = vmatprep.subr.mxu0 %v416
    %1726 = vmatpush1.msra.mxu0 %v415
    %1727 = vmatprep.subr.mxu0 %v420
    %1728 = vmatpush1.msra.mxu0 %v419
    %1729 = vmatprep.subr.mxu0 %v424
    %1730 = vmatpush1.msra.mxu0 %v423
    %1731 = vmatprep.subr.mxu0 %v428
    %1732 = vmatpush1.msra.mxu0 %v427
    %1733 = vmatprep.subr.mxu0 %v432
    %1734 = vmatpush1.msra.mxu0 %v431
    %1735 = vmatprep.subr.mxu0 0.0
    %1736 = vmatpush1.msra.mxu0 0.0
    %1737 = vmatprep.subr.mxu0 0.0
    %1738 = vmatpush1.msra.mxu0 0.0
    %1739 = vmatprep.subr.mxu0 0.0
    %1740 = vmatpush1.msra.mxu0 0.0
    %1741 = vmatprep.subr.mxu0 0.0
    %1742 = vmatpush1.msra.mxu0 0.0
    %1743 = vmatprep.subr.mxu0 0.0
    %1744 = vmatpush1.msra.mxu0 0.0
    %1745 = vmatprep.subr.mxu0 0.0
    %1746 = vmatpush1.msra.mxu0 0.0
    %1747 = vmatprep.subr.mxu0 0.0
    %1748 = vmatpush1.msra.mxu0 0.0
    %1749 = vmatprep.subr.mxu0 0.0
    %1750 = vmatpush1.msra.mxu0 0.0
    %1751 = vmatprep.subr.mxu0 0.0
    %1752 = vmatpush1.msra.mxu0 0.0
    %1753 = vmatprep.subr.mxu0 0.0
    %1754 = vmatpush1.msra.mxu0 0.0
    %1755 = vmatprep.subr.mxu0 0.0
    %1756 = vmatpush1.msra.mxu0 0.0
    %1757 = vmatprep.subr.mxu0 0.0
    %1758 = vmatpush1.msra.mxu0 0.0
    %1759 = vmatprep.subr.mxu0 0.0
    %1760 = vmatpush1.msra.mxu0 0.0
    %1761 = vmatprep.subr.mxu0 0.0
    %1762 = vmatpush1.msra.mxu0 0.0
    %1763 = vmatprep.subr.mxu0 0.0
    %1764 = vmatpush1.msra.mxu0 0.0
    %1765 = vmatprep.subr.mxu0 0.0
    %1766 = vmatpush1.msra.mxu0 0.0
    %1767 = vmatprep.mubr.f32.mxu0 0.0
    %1768 = vmatmul.mubr.f32.gmra.mrb[0].mxu0 %v1630
    %v1769 = vpop.f32.mrb[0].mxu0
    %v1770 = vadd.f32 0.0, %v1769
    %v1771 = vpop.f32.mrb[0].mxu0
    %v1772 = vadd.f32 0.0, %v1771
    %1773 = vdwg.mxu0
    %v1774 = vadd.f32 %v252, %v1699
    %v1775 = vadd.f32 %v254, %v1701
    %v1776 = vadd.f32 %v365, %v1770
    %v1777 = vadd.f32 %v367, %v1772
    %v1778 = vxor.u32 %v1774, 2147483648
    %v1779 = vmul.f32 %v1778, 1.442695
    %v1780 = vpow.pop %v1779
    %v1781 = vadd.f32 %v1780, 1.0
    %v1782 = vrcp.pop %v1781
    %v1783 = vmul.f32 1.0, %v1782
    %v1784 = vxor.u32 %v1775, 2147483648
    %v1785 = vmul.f32 %v1784, 1.442695
    %v1786 = vpow.pop %v1785
    %v1787 = vadd.f32 %v1786, 1.0
    %v1788 = vrcp.pop %v1787
    %v1789 = vmul.f32 1.0, %v1788
    %v1790 = vtanh.pop %v1776
    %v1791 = vxor.u32 %v1777, 2147483648
    %v1792 = vmul.f32 %v1791, 1.442695
    %v1793 = vpow.pop %v1792
    %v1794 = vadd.f32 %v1793, 1.0
    %v1795 = vrcp.pop %v1794
    %v1796 = vmul.f32 1.0, %v1795
    %v1797 = vmul.f32 %v1789, %v1628
    %v1798 = vmul.f32 %v1783, %v1790
    %v1799 = vadd.f32 %v1797, %v1798
    %v1800 = vtanh.pop %v1799
    %v1801 = vmul.f32 %v1796, %v1800
    %1802 = vst [vmem:[#allocation2 + $0x38] sm:$0xff] %v1801
    %1803 = vst [vmem:[#allocation6] sm:$0xff] %v1801
    %1804 = vst [vmem:[#allocation7] sm:$0xff] %v1799
    %v1805 = vld [vmem:[#allocation2] sm:$0xff]
    %v1806 = vld [vmem:[#allocation2 + $0x8] sm:$0xff]
    %v1807 = vld [vmem:[#allocation2 + $0x10] sm:$0xff]
    %v1808 = vld [vmem:[#allocation2 + $0x18] sm:$0xff]
    %v1809 = vld [vmem:[#allocation2 + $0x20] sm:$0xff]
    %v1810 = vld [vmem:[#allocation2 + $0x28] sm:$0xff]
    %v1811 = vld [vmem:[#allocation2 + $0x30] sm:$0xff]
    %v1812 = vld [vmem:[#allocation2 + $0x38] sm:$0xff]
    %v1813 = vpack.c.bf16 %v1806, %v1805
    %v1814 = vpack.c.bf16 %v1808, %v1807
    %v1815 = vpack.c.bf16 %v1810, %v1809
    %v1816 = vpack.c.bf16 %v1812, %v1811
    %v1817 = vld [vmem:[%s6] sm:$0xff]
    %v1818 = vld [vmem:[%s6 + $0x8] sm:$0xff]
    %v1819 = vld [vmem:[%s6 + $0x10] sm:$0xff]
    %v1820 = vld [vmem:[%s6 + $0x18] sm:$0xff]
    %v1821 = vld [vmem:[%s6 + $0x20] sm:$0xff]
    %v1822 = vld [vmem:[%s6 + $0x28] sm:$0xff]
    %v1823 = vld [vmem:[%s6 + $0x30] sm:$0xff]
    %v1824 = vld [vmem:[%s6 + $0x38] sm:$0xff]
    %v1825 = vld [vmem:[%s6 + $0x40] sm:$0xff]
    %v1826 = vld [vmem:[%s6 + $0x48] sm:$0xff]
    %v1827 = vld [vmem:[%s6 + $0x50] sm:$0xff]
    %v1828 = vld [vmem:[%s6 + $0x58] sm:$0xff]
    %v1829 = vld [vmem:[%s6 + $0x60] sm:$0xff]
    %v1830 = vld [vmem:[%s6 + $0x68] sm:$0xff]
    %v1831 = vld [vmem:[%s6 + $0x70] sm:$0xff]
    %v1832 = vld [vmem:[%s6 + $0x78] sm:$0xff]
    %v1833 = vld [vmem:[%s7] sm:$0x3]
    %v1835 = vlaneseq
    %v1836 = vshrl.u32 %v1835, 7
    %v1837 = vsub.s32 0, %v1836
    %v1838 = vrot.slane %v1833, %v1837
    %v1839 = vlaneseq
    %v1840 = vshrl.u32 %v1839, 7
    %v1841 = vsub.s32 1, %v1840
    %v1842 = vrot.slane %v1833, %v1841
    %v1861 = vunpack.c.l.b16 %v1817
    %v1862 = vunpack.c.h.b16 %v1817
    %v1863 = vunpack.c.l.b16 %v1818
    %v1864 = vunpack.c.h.b16 %v1818
    %v1865 = vunpack.c.l.b16 %v1819
    %v1866 = vunpack.c.h.b16 %v1819
    %v1867 = vunpack.c.l.b16 %v1820
    %v1868 = vunpack.c.h.b16 %v1820
    %v1869 = vunpack.c.l.b16 %v1821
    %v1870 = vunpack.c.h.b16 %v1821
    %v1871 = vunpack.c.l.b16 %v1822
    %v1872 = vunpack.c.h.b16 %v1822
    %v1873 = vunpack.c.l.b16 %v1823
    %v1874 = vunpack.c.h.b16 %v1823
    %v1875 = vunpack.c.l.b16 %v1824
    %v1876 = vunpack.c.h.b16 %v1824
    %v1877 = vunpack.c.l.b16 %v1825
    %v1878 = vunpack.c.h.b16 %v1825
    %v1879 = vunpack.c.l.b16 %v1826
    %v1880 = vunpack.c.h.b16 %v1826
    %v1881 = vunpack.c.l.b16 %v1827
    %v1882 = vunpack.c.h.b16 %v1827
    %v1883 = vunpack.c.l.b16 %v1828
    %v1884 = vunpack.c.h.b16 %v1828
    %v1885 = vunpack.c.l.b16 %v1829
    %v1886 = vunpack.c.h.b16 %v1829
    %v1887 = vunpack.c.l.b16 %v1830
    %v1888 = vunpack.c.h.b16 %v1830
    %v1889 = vunpack.c.l.b16 %v1831
    %v1890 = vunpack.c.h.b16 %v1831
    %v1891 = vunpack.c.l.b16 %v1832
    %v1892 = vunpack.c.h.b16 %v1832
    %v1893 = vpack.c.b16 %v1863, %v1861
    %v1894 = vpack.c.b16 %v1864, %v1862
    %v1895 = vpack.c.b16 %v1867, %v1865
    %v1896 = vpack.c.b16 %v1868, %v1866
    %v1897 = vpack.c.b16 %v1871, %v1869
    %v1898 = vpack.c.b16 %v1872, %v1870
    %v1899 = vpack.c.b16 %v1875, %v1873
    %v1900 = vpack.c.b16 %v1876, %v1874
    %v1901 = vpack.c.b16 %v1879, %v1877
    %v1902 = vpack.c.b16 %v1880, %v1878
    %v1903 = vpack.c.b16 %v1883, %v1881
    %v1904 = vpack.c.b16 %v1884, %v1882
    %v1905 = vpack.c.b16 %v1887, %v1885
    %v1906 = vpack.c.b16 %v1888, %v1886
    %v1907 = vpack.c.b16 %v1891, %v1889
    %v1908 = vpack.c.b16 %v1892, %v1890
    %1925 = vmatprep.subr.bf16.mxu0 %v1894
    %1926 = vmatpush1.bf16.msra.mxu0 %v1893
    %1927 = vmatprep.subr.bf16.mxu0 %v1896
    %1928 = vmatpush1.bf16.msra.mxu0 %v1895
    %1929 = vmatprep.subr.bf16.mxu0 %v1898
    %1930 = vmatpush1.bf16.msra.mxu0 %v1897
    %1931 = vmatprep.subr.bf16.mxu0 %v1900
    %1932 = vmatpush1.bf16.msra.mxu0 %v1899
    %1933 = vmatprep.subr.bf16.mxu0 %v1902
    %1934 = vmatpush1.bf16.msra.mxu0 %v1901
    %1935 = vmatprep.subr.bf16.mxu0 %v1904
    %1936 = vmatpush1.bf16.msra.mxu0 %v1903
    %1937 = vmatprep.subr.bf16.mxu0 %v1906
    %1938 = vmatpush1.bf16.msra.mxu0 %v1905
    %1939 = vmatprep.subr.bf16.mxu0 %v1908
    %1940 = vmatpush1.bf16.msra.mxu0 %v1907
    %1941 = vmatprep.subr.bf16.mxu0 0
    %1942 = vmatpush1.bf16.msra.mxu0 0
    %1943 = vmatprep.subr.bf16.mxu0 0
    %1944 = vmatpush1.bf16.msra.mxu0 0
    %1945 = vmatprep.subr.bf16.mxu0 0
    %1946 = vmatpush1.bf16.msra.mxu0 0
    %1947 = vmatprep.subr.bf16.mxu0 0
    %1948 = vmatpush1.bf16.msra.mxu0 0
    %1949 = vmatprep.subr.bf16.mxu0 0
    %1950 = vmatpush1.bf16.msra.mxu0 0
    %1951 = vmatprep.subr.bf16.mxu0 0
    %1952 = vmatpush1.bf16.msra.mxu0 0
    %1953 = vmatprep.subr.bf16.mxu0 0
    %1954 = vmatpush1.bf16.msra.mxu0 0
    %1955 = vmatprep.subr.bf16.mxu0 0
    %1956 = vmatpush1.bf16.msra.mxu0 0
    %1957 = vmatprep.mubr.bf16.mxu0 0
    %1958 = vmatmul.mubr.bf16.gmra.mrb[0].mxu0 %v1813
    %v1959 = vpop.f32.mrb[0].mxu0
    %v1960 = vadd.f32 %v1838, %v1959
    %v1961 = vpop.f32.mrb[0].mxu0
    %v1962 = vadd.f32 %v1842, %v1961
    %v1963 = vpop.f32.mrb[0].mxu0
    %v1964 = vadd.f32 %v1838, %v1963
    %v1965 = vpop.f32.mrb[0].mxu0
    %v1966 = vadd.f32 %v1842, %v1965
    %1967 = vmatprep.mubr.bf16.mxu0 0
    %1968 = vmatmul.mubr.bf16.gmra.mrb[0].mxu0 %v1814
    %v1969 = vpop.f32.mrb[0].mxu0
    %v1970 = vadd.f32 %v1838, %v1969
    %v1971 = vpop.f32.mrb[0].mxu0
    %v1972 = vadd.f32 %v1842, %v1971
    %v1973 = vpop.f32.mrb[0].mxu0
    %v1974 = vadd.f32 %v1838, %v1973
    %v1975 = vpop.f32.mrb[0].mxu0
    %v1976 = vadd.f32 %v1842, %v1975
    %1977 = vmatprep.mubr.bf16.mxu0 0
    %1978 = vmatmul.mubr.bf16.gmra.mrb[0].mxu0 %v1815
    %v1979 = vpop.f32.mrb[0].mxu0
    %v1980 = vadd.f32 %v1838, %v1979
    %v1981 = vpop.f32.mrb[0].mxu0
    %v1982 = vadd.f32 %v1842, %v1981
    %v1983 = vpop.f32.mrb[0].mxu0
    %v1984 = vadd.f32 %v1838, %v1983
    %v1985 = vpop.f32.mrb[0].mxu0
    %v1986 = vadd.f32 %v1842, %v1985
    %1987 = vmatprep.mubr.bf16.mxu0 0
    %1988 = vmatmul.mubr.bf16.gmra.mrb[0].mxu0 %v1816
    %v1989 = vpop.f32.mrb[0].mxu0
    %v1990 = vadd.f32 %v1838, %v1989
    %v1991 = vpop.f32.mrb[0].mxu0
    %v1992 = vadd.f32 %v1842, %v1991
    %v1993 = vpop.f32.mrb[0].mxu0
    %v1994 = vadd.f32 %v1838, %v1993
    %v1995 = vpop.f32.mrb[0].mxu0
    %v1996 = vadd.f32 %v1842, %v1995
    %1997 = vdwg.mxu0
    %1998 = vst [vmem:[%s8] sm:$0xff] %v1960
    %1999 = vst [vmem:[%s8 + $0x8] sm:$0xff] %v1962
    %2000 = vst [vmem:[%s8 + $0x10] sm:$0xff] %v1964
    %2001 = vst [vmem:[%s8 + $0x18] sm:$0xff] %v1966
    %2002 = vst [vmem:[%s8 + $0x20] sm:$0xff] %v1970
    %2003 = vst [vmem:[%s8 + $0x28] sm:$0xff] %v1972
    %2004 = vst [vmem:[%s8 + $0x30] sm:$0xff] %v1974
    %2005 = vst [vmem:[%s8 + $0x38] sm:$0xff] %v1976
    %2006 = vst [vmem:[%s8 + $0x40] sm:$0xff] %v1980
    %2007 = vst [vmem:[%s8 + $0x48] sm:$0xff] %v1982
    %2008 = vst [vmem:[%s8 + $0x50] sm:$0xff] %v1984
    %2009 = vst [vmem:[%s8 + $0x58] sm:$0xff] %v1986
    %2010 = vst [vmem:[%s8 + $0x60] sm:$0xff] %v1990
    %2011 = vst [vmem:[%s8 + $0x68] sm:$0xff] %v1992
    %2012 = vst [vmem:[%s8 + $0x70] sm:$0xff] %v1994
    %2013 = vst [vmem:[%s8 + $0x78] sm:$0xff] %v1996
    // Predicated region
    $region38: #{language_model_forward.1} parent=1 // pred_check
      _
    $region39: #{language_model_forward.1} parent=1 // pred_check_branch
      %2015 = sbr.rel (0) target = $region41
    $region40: #{language_model_forward.1} parent=1 // pred_region
      _
    $region41: #{language_model_forward.1} parent=1 // pred_fallthru
      _
    // Predicated region
    $region42: #{language_model_forward.1} parent=1 // pred_check
      _
    $region43: #{language_model_forward.1} parent=1 // pred_check_branch
      %2017 = sbr.rel (0) target = $region45
    $region44: #{language_model_forward.1} parent=1 // pred_region
      %s2019 = ssub.s32 128, 128
      %2020 = vsyncadd [#allocation5], %s2019
      %s2022 = sshll.u32 [#allocation6], 4
      %s2023 = int_to_ptr.vmem [resolvable:$true] %s2022
      %2025 = dma.vmem_to_hbm [thread:$0]  %s2023, 128, %s9, [#allocation5]
    $region45: #{language_model_forward.1} parent=1 // pred_fallthru
      _
    // Predicated region
    $region46: #{language_model_forward.1} parent=1 // pred_check
      _
    $region47: #{language_model_forward.1} parent=1 // pred_check_branch
      %2027 = sbr.rel (0) target = $region49
    $region48: #{language_model_forward.1} parent=1 // pred_region
      %s2029 = ssub.s32 128, 128
      %2030 = vsyncadd [#allocation8], %s2029
      %s2032 = sshll.u32 [#allocation7], 4
      %s2033 = int_to_ptr.vmem [resolvable:$true] %s2032
      %2035 = dma.vmem_to_hbm [thread:$0]  %s2033, 128, %s10, [#allocation8]
    $region49: #{language_model_forward.1} parent=1 // pred_fallthru
      _
    // Predicated region
    $region50: #{language_model_forward.1} parent=1 // pred_check
      _
    $region51: #{language_model_forward.1} parent=1 // pred_check_branch
      %2037 = sbr.rel (0) target = $region53
    $region52: #{language_model_forward.1} parent=1 // pred_region
      _
    $region53: #{language_model_forward.1} parent=1 // pred_fallthru
      _
    // Predicated region
    $region54: #{language_model_forward.1} parent=1 // pred_check
      _
    $region55: #{language_model_forward.1} parent=1 // pred_check_branch
      %2039 = sbr.rel (0) target = $region57
    $region56: #{language_model_forward.1} parent=1 // pred_region
      %2040 = dma.done [#allocation5], 128
    $region57: #{language_model_forward.1} parent=1 // pred_fallthru
      _
    // Predicated region
    $region58: #{language_model_forward.1} parent=1 // pred_check
      _
    $region59: #{language_model_forward.1} parent=1 // pred_check_branch
      %2042 = sbr.rel (0) target = $region61
    $region60: #{language_model_forward.1} parent=1 // pred_region
      %2043 = dma.done [#allocation8], 128
    $region61: #{language_model_forward.1} parent=1 // pred_fallthru
      _
    %2044 = vsyncpa [#allocation4], 1
    %2045 = vsyncpa [#allocation5], 1
    %2046 = vsyncpa [#allocation8], 1

</llo_original>
